<compile_context>
chip_gen: v7x
topology: tpu7x:2x2x1
jax: 0.10.0
libtpu: 0.0.40
codegen_flags: <defaults>
</compile_context>

<pallas_src>
import functools

import numpy as np
import jax
import jax.numpy as jnp
from jax import lax
from jax.experimental import pallas as pl
from jax.experimental.pallas import tpu as pltpu

ROT = 4
BN_EPS = 1e-5


def _round_up(x, n):
    return (x + n - 1) // n * n


def _rotate_offsets(ks, r=ROT, scale=1):
    """Mirrors Rotate_Conv_noshare.cal_rot_pad: rounded rotated tap offsets.

    Returns (off, m): off[i, t] = (dy, dx) for rotation i and tap t = ky*ks+kx,
    and m is the spatial padding used by the reference.
    """
    def rotate_matrix(theta):
        return np.array([[np.cos(theta), -np.sin(theta)],
                         [np.sin(theta), np.cos(theta)]])

    s1 = s2 = ks
    locx = np.array([[j - (s2 - 1) / 2 for j in range(s2)] for _ in range(s1)])
    locy = np.array([[i - (s1 - 1) / 2 for _ in range(s2)] for i in range(s1)])
    loc = np.concatenate((locx.reshape(-1, 1), locy.reshape(-1, 1)), axis=1) * scale

    offs, m = [], 0
    for i in range(r):
        l = np.around(loc @ rotate_matrix(2 * np.pi / r * i)).astype(np.int64)
        offs.append(l)
        m = max(m, int(np.max(l)))
    # per rotation, per tap: (dy, dx) = (l[:, 1], l[:, 0])
    off = np.stack([np.stack([l[:, 1], l[:, 0]], axis=-1) for l in offs], axis=0)
    return off.astype(np.int64), m


def _rotconv_kernel(x_ref, w_ref, mask_ref, o_ref, s1_ref, s2_ref, *,
                    starts, m_pad, l_lane):
    """One grid step = one image: fused block-diagonal conv + partial BN stats."""
    acc = jnp.zeros((m_pad, l_lane), jnp.float32)
    # Direct shifted-dot accumulation (no im2col scratch): one (M, RC) x (RC, L)
    # MXU matmul per distinct rotated tap offset, f32 accumulation.
    for o, s in enumerate(starts):               # static python ints -> static slices
        acc = acc + jnp.dot(w_ref[o], x_ref[0, :, s:s + l_lane],
                            preferred_element_type=jnp.float32)
    o_ref[0] = acc.astype(o_ref.dtype)

    # Per-image partial BatchNorm statistics (masked so halo / alignment lanes
    # are excluded).  Finalized in the wrapper, keeping this grid axis
    # "parallel" (megacore-safe cross-tile reduction).
    mask = mask_ref[...]                         # (1, l_lane) f32, 1.0 on valid lanes
    am = acc * mask
    s1_ref[0] = jnp.sum(am, axis=-1, keepdims=True)          # (m_pad, 1)
    s2_ref[0] = jnp.sum(am * acc, axis=-1, keepdims=True)    # masked sum of squares


def rotate_conv_noshare(x, weight, gamma, beta, *, ks, ifbn=True, s=1,
                        compute_dtype=jnp.bfloat16):
    """x: (N, Cin, H, W) NCHW; weight: (Cout//4, Cin//4, ks, ks).

    compute_dtype: dtype of the matmul operands (bf16 default = native MXU path
    on v5e/v6e/v7x and half the HBM/VMEM input traffic). BN statistics, the
    accumulator and the normalization stay in f32 regardless.
    """
    # TODO(synk): stride s != 1 not implemented (module default s=1 is used).
    assert s == 1
    N, Cin, H, W = x.shape
    r = ROT
    assert Cin % r == 0
    cin_g = Cin // r
    cout_g = weight.shape[0]
    assert weight.shape == (cout_g, cin_g, ks, ks)

    off_np, m = _rotate_offsets(ks, r)                 # (r, ks*ks, 2) int
    assert m >= 1, "reference crop [m:-m] requires m >= 1 (use ks >= 3)"
    Hp, Wp = H + 2 * m, W + 2 * m
    k_taps = ks * ks

    M = r * cout_g          # fused output rows; row index rot*cout_g+co == torch order
    RC = r * cin_g          # fused contraction rows
    M_pad = _round_up(M, 8)
    RC_pad = _round_up(RC, 8)

    # distinct rotated tap offsets across all rotations; taps of one rotation
    # that round to the same offset are merged by summing their weights.
    uniq = []
    for i in range(r):
        for t in range(k_taps):
            d = (int(off_np[i, t, 0]), int(off_np[i, t, 1]))
            if d not in uniq:
                uniq.append(d)
    n_off = len(uniq)

    # lane layout (per image): flat index p = y*Wp + x (stride Wp), so tap offset
    # (dy, dx) becomes ONE static lane shift start = (m-dy)*Wp + (m-dx).
    L_lane = _round_up(Hp * Wp, 128)
    starts = tuple((m - dy) * Wp + (m - dx) for (dy, dx) in uniq)
    Lin = _round_up(max(starts) + L_lane, 128)         # keeps every slice in-bounds

    # ---- host-side layout plumbing (no FLOPs) ---------------------------------
    xg = x.astype(jnp.float32).reshape(N, RC, H, W)    # channel idx = rot*cin_g+ci
    xg = jnp.pad(xg, ((0, 0), (0, 0), (m, m), (m, m)))           # zero spatial halo
    xg = xg.reshape(N, RC, Hp * Wp)
    xg = jnp.pad(xg, ((0, 0), (0, RC_pad - RC), (0, Lin - Hp * Wp)))
    xg = xg.astype(compute_dtype)

    # block-diagonal fused weights: one (M_pad, RC_pad) matrix per unique offset
    w_f32 = weight.astype(jnp.float32)
    w_mats = []
    for d in uniq:
        full = jnp.zeros((M, RC), jnp.float32)
        for i in range(r):
            taps = [t for t in range(k_taps)
                    if (int(off_np[i, t, 0]), int(off_np[i, t, 1])) == d]
            if not taps:
                continue
            wb = w_f32[:, :, taps[0] // ks, taps[0] % ks]
            for t in taps[1:]:
                wb = wb + w_f32[:, :, t // ks, t % ks]
            full = full + jnp.pad(wb, ((i * cout_g, (r - 1 - i) * cout_g),
                                       (i * cin_g, (r - 1 - i) * cin_g)))
        w_mats.append(full)
    w_all = jnp.stack(w_mats, axis=0)                            # (n_off, M, RC)
    w_all = jnp.pad(w_all, ((0, 0), (0, M_pad - M), (0, RC_pad - RC)))
    w_all = w_all.astype(compute_dtype)

    # validity mask over the L_lane positions (excludes halo / alignment padding)
    q = np.arange(L_lane)
    valid = ((q // Wp) < H) & ((q % Wp) < W)
    mask = jnp.asarray(valid.astype(np.float32)).reshape(1, L_lane)

    itemsize = jnp.dtype(compute_dtype).itemsize
    flops = 2 * N * n_off * M_pad * RC_pad * L_lane
    bytes_accessed = (N * RC_pad * Lin * itemsize           # x
                      + n_off * M_pad * RC_pad * itemsize   # weights
                      + L_lane * 4                          # mask
                      + N * M_pad * L_lane * 4              # conv out
                      + 2 * N * M_pad * 4)                  # partial stats

    kernel = functools.partial(_rotconv_kernel, starts=starts,
                               m_pad=M_pad, l_lane=L_lane)

    conv_flat, s1p, s2p = pl.pallas_call(
        kernel,
        out_shape=(jax.ShapeDtypeStruct((N, M_pad, L_lane), jnp.float32),
                   jax.ShapeDtypeStruct((N, M_pad, 1), jnp.float32),
                   jax.ShapeDtypeStruct((N, M_pad, 1), jnp.float32)),
        grid=(N,),                                         # one image per step
        in_specs=[
            pl.BlockSpec((1, RC_pad, Lin), lambda n: (n, 0, 0)),        # image rows
            pl.BlockSpec((n_off, M_pad, RC_pad), lambda n: (0, 0, 0)),  # weights
            pl.BlockSpec((1, L_lane), lambda n: (0, 0)),                # BN mask
        ],
        out_specs=(
            pl.BlockSpec((1, M_pad, L_lane), lambda n: (n, 0, 0)),      # conv out
            pl.BlockSpec((1, M_pad, 1), lambda n: (n, 0, 0)),           # sum
            pl.BlockSpec((1, M_pad, 1), lambda n: (n, 0, 0)),           # sum of sq
        ),
        compiler_params=pltpu.CompilerParams(
            dimension_semantics=("parallel",),             # 2 TCs on v7x
            vmem_limit_bytes=32 * 1024 * 1024),            # >> per-step footprint
        cost_estimate=pl.CostEstimate(flops=flops, transcendentals=0,
                                      bytes_accessed=bytes_accessed),
    )(xg, w_all, mask)
    # TODO(synk): for very large spatial extents (H*W >> 28*28) add an inner
    # lane-tile grid axis (x row stays resident, output/mask tiled with pl.ds).

    # ---- BN finalize + normalize + crop: one fused XLA epilogue pass ----------
    if ifbn:
        count = float(N * H * W)
        s1t = jnp.sum(s1p[:, :M, 0], axis=0)               # cross-tile reduction
        s2t = jnp.sum(s2p[:, :M, 0], axis=0)
        mu = s1t / count
        var = jnp.maximum(s2t / count - mu * mu, 0.0)       # biased variance
        g = jnp.tile(gamma.astype(jnp.float32), r)          # affine shared across rots
        b = jnp.tile(beta.astype(jnp.float32), r)
        scale = g * lax.rsqrt(var + BN_EPS)
        shift = b - mu * scale
        out = (conv_flat[:, :M, :Hp * Wp] * scale[None, :, None]
               + shift[None, :, None])
    else:
        out = conv_flat[:, :M, :Hp * Wp]
    # channel rows already follow torch.cat ordering and batch leads:
    # only a spatial crop remains (no transpose, no extra HBM round trip).
    return out.reshape(N, M, Hp, Wp)[:, :, :H, :W]


def rotate_conv_noshare_ref(x, weight, gamma, beta, *, ks, ifbn=True):
    """Pure-JAX reference (same math, no Pallas) for validation."""
    N, Cin, H, W = x.shape
    r = ROT
    cg = Cin // r
    cout_g = weight.shape[0]
    off, m = _rotate_offsets(ks, r)
    outs = []
    for i in range(r):
        xi = x[:, i * cg:(i + 1) * cg].astype(jnp.float32)
        xp = jnp.pad(xi, ((0, 0), (0, 0), (m, m), (m, m)))
        acc = jnp.zeros((N, cout_g, H, W), jnp.float32)
        for t in range(ks * ks):
            ky, kx = t // ks, t % ks
            dy, dx = int(off[i, t, 0]), int(off[i, t, 1])
            patch = xp[:, :, m - dy:m - dy + H, m - dx:m - dx + W]
            wt = weight[:, :, ky, kx].astype(jnp.float32)          # (cout_g, cg)
            acc = acc + jnp.einsum('ncyx,oc->noyx', patch, wt,
                                   precision=lax.Precision.HIGHEST)
        if ifbn:
            mu = jnp.mean(acc, axis=(0, 2, 3), keepdims=True)
            var = jnp.mean((acc - mu) ** 2, axis=(0, 2, 3), keepdims=True)
            acc = ((acc - mu) / jnp.sqrt(var + BN_EPS)
                   * gamma.reshape(1, -1, 1, 1) + beta.reshape(1, -1, 1, 1))
        outs.append(acc)
    return jnp.concatenate(outs, axis=1)


if __name__ == "__main__":
    key = jax.random.PRNGKey(0)
    k_x, k_w = jax.random.split(key, 2)

    # Module config: Rotate_Conv_noshare(in_channel=8, out_channel=16, ks=3)
    N, Cin, Cout, H, W, ks = 2, 8, 16, 16, 16, 3
    x = jax.random.normal(k_x, (N, Cin, H, W), jnp.float32)
    # conv weight shape per __init__: (out_channel//4, in_channel//4, ks, ks)
    conv_weight = 0.1 * jax.random.normal(k_w, (Cout // ROT, Cin // ROT, ks, ks),
                                          jnp.float32)
    # (conv bias exists in __init__ but is never used in the reference forward)
    bn_gamma = jnp.ones((Cout // ROT,), jnp.float32)     # BatchNorm2d default init
    bn_beta = jnp.zeros((Cout // ROT,), jnp.float32)

    ref = rotate_conv_noshare_ref(x, conv_weight, bn_gamma, bn_beta, ks=ks, ifbn=True)

    # f32 operand path: bit-for-bit comparable with the HIGHEST-precision reference.
    out_f32 = rotate_conv_noshare(x, conv_weight, bn_gamma, bn_beta, ks=ks,
                                  ifbn=True, compute_dtype=jnp.float32)
    out_f32 = jax.block_until_ready(out_f32)
    assert out_f32.shape == (N, Cout, H, W)
    np.testing.assert_allclose(np.asarray(out_f32), np.asarray(ref),
                               rtol=2e-3, atol=2e-3)

    # bf16 operand path (default): looser tolerance = expected operand quantization.
    out_bf16 = rotate_conv_noshare(x, conv_weight, bn_gamma, bn_beta, ks=ks,
                                   ifbn=True)
    out_bf16 = jax.block_until_ready(out_bf16)
    assert out_bf16.shape == (N, Cout, H, W)
    np.testing.assert_allclose(np.asarray(out_bf16), np.asarray(ref),
                               rtol=3e-2, atol=3e-2)

    print("KERNEL_OK")
</pallas_src>

<mosaic_0001>
module attributes {stable_mosaic.version = 11 : i64} {
  func.func @_rotconv_kernel(%arg0: i32, %arg1: memref<1x8x512xf32, #tpu.memory_space<vmem>>, %arg2: memref<9x16x8xf32, #tpu.memory_space<vmem>>, %arg3: memref<1x384xf32, #tpu.memory_space<vmem>>, %arg4: memref<1x16x384xf32, #tpu.memory_space<vmem>>, %arg5: memref<1x16x1xf32, #tpu.memory_space<vmem>>, %arg6: memref<1x16x1xf32, #tpu.memory_space<vmem>>) attributes {dimension_semantics = [#tpu.dimension_semantics<parallel>], iteration_bounds = array<i64: 2>, scalar_prefetch = 0 : i64, scratch_operands = 0 : i64, tpu.core_type = #tpu.core_type<tc>, window_params = [{transform_indices = @transform_0, window_bounds = array<i64: 1, 8, 512>}, {pipeline_mode = #tpu.pipeline_mode<synchronous>, transform_indices = @transform_1, window_bounds = array<i64: 9, 16, 8>}, {pipeline_mode = #tpu.pipeline_mode<synchronous>, transform_indices = @transform_2, window_bounds = array<i64: 1, 384>}, {transform_indices = @transform_3, window_bounds = array<i64: 1, 16, 384>}, {transform_indices = @transform_4, window_bounds = array<i64: 1, 16, 1>}, {transform_indices = @transform_5, window_bounds = array<i64: 1, 16, 1>}]} {
    %cst = arith.constant 0.000000e+00 : f32
    %0 = vector.broadcast %cst : f32 to vector<16x384xf32>
    %c0 = arith.constant 0 : index
    %c0_0 = arith.constant 0 : index
    %c0_1 = arith.constant 0 : index
    %1 = vector.load %arg2[%c0, %c0_0, %c0_1] : memref<9x16x8xf32, #tpu.memory_space<vmem>>, vector<1x16x8xf32>
    %2 = vector.shape_cast %1 : vector<1x16x8xf32> to vector<16x8xf32>
    %c0_2 = arith.constant 0 : index
    %c0_3 = arith.constant 0 : index
    %c38 = arith.constant 38 : index
    %3 = vector.load %arg1[%c0_2, %c0_3, %c38] : memref<1x8x512xf32, #tpu.memory_space<vmem>>, vector<1x8x384xf32>
    %4 = vector.shape_cast %3 : vector<1x8x384xf32> to vector<8x384xf32>
    %cst_4 = arith.constant dense<0.000000e+00> : vector<16x384xf32>
    %5 = tpu.matmul %2, %4, %cst_4 {dimension_numbers = #tpu.dot_dimension_numbers<[1], [0], [0], [1], [0, 0, 1, 1], [], []>} : vector<16x8xf32>, vector<8x384xf32>, vector<16x384xf32> -> vector<16x384xf32>
    %6 = arith.addf %0, %5 : vector<16x384xf32>
    %c1 = arith.constant 1 : index
    %c0_5 = arith.constant 0 : index
    %c0_6 = arith.constant 0 : index
    %7 = vector.load %arg2[%c1, %c0_5, %c0_6] : memref<9x16x8xf32, #tpu.memory_space<vmem>>, vector<1x16x8xf32>
    %8 = vector.shape_cast %7 : vector<1x16x8xf32> to vector<16x8xf32>
    %c0_7 = arith.constant 0 : index
    %c0_8 = arith.constant 0 : index
    %c37 = arith.constant 37 : index
    %9 = vector.load %arg1[%c0_7, %c0_8, %c37] : memref<1x8x512xf32, #tpu.memory_space<vmem>>, vector<1x8x384xf32>
    %10 = vector.shape_cast %9 : vector<1x8x384xf32> to vector<8x384xf32>
    %cst_9 = arith.constant dense<0.000000e+00> : vector<16x384xf32>
    %11 = tpu.matmul %8, %10, %cst_9 {dimension_numbers = #tpu.dot_dimension_numbers<[1], [0], [0], [1], [0, 0, 1, 1], [], []>} : vector<16x8xf32>, vector<8x384xf32>, vector<16x384xf32> -> vector<16x384xf32>
    %12 = arith.addf %6, %11 : vector<16x384xf32>
    %c2 = arith.constant 2 : index
    %c0_10 = arith.constant 0 : index
    %c0_11 = arith.constant 0 : index
    %13 = vector.load %arg2[%c2, %c0_10, %c0_11] : memref<9x16x8xf32, #tpu.memory_space<vmem>>, vector<1x16x8xf32>
    %14 = vector.shape_cast %13 : vector<1x16x8xf32> to vector<16x8xf32>
    %c0_12 = arith.constant 0 : index
    %c0_13 = arith.constant 0 : index
    %c36 = arith.constant 36 : index
    %15 = vector.load %arg1[%c0_12, %c0_13, %c36] : memref<1x8x512xf32, #tpu.memory_space<vmem>>, vector<1x8x384xf32>
    %16 = vector.shape_cast %15 : vector<1x8x384xf32> to vector<8x384xf32>
    %cst_14 = arith.constant dense<0.000000e+00> : vector<16x384xf32>
    %17 = tpu.matmul %14, %16, %cst_14 {dimension_numbers = #tpu.dot_dimension_numbers<[1], [0], [0], [1], [0, 0, 1, 1], [], []>} : vector<16x8xf32>, vector<8x384xf32>, vector<16x384xf32> -> vector<16x384xf32>
    %18 = arith.addf %12, %17 : vector<16x384xf32>
    %c3 = arith.constant 3 : index
    %c0_15 = arith.constant 0 : index
    %c0_16 = arith.constant 0 : index
    %19 = vector.load %arg2[%c3, %c0_15, %c0_16] : memref<9x16x8xf32, #tpu.memory_space<vmem>>, vector<1x16x8xf32>
    %20 = vector.shape_cast %19 : vector<1x16x8xf32> to vector<16x8xf32>
    %c0_17 = arith.constant 0 : index
    %c0_18 = arith.constant 0 : index
    %c20 = arith.constant 20 : index
    %21 = vector.load %arg1[%c0_17, %c0_18, %c20] : memref<1x8x512xf32, #tpu.memory_space<vmem>>, vector<1x8x384xf32>
    %22 = vector.shape_cast %21 : vector<1x8x384xf32> to vector<8x384xf32>
    %cst_19 = arith.constant dense<0.000000e+00> : vector<16x384xf32>
    %23 = tpu.matmul %20, %22, %cst_19 {dimension_numbers = #tpu.dot_dimension_numbers<[1], [0], [0], [1], [0, 0, 1, 1], [], []>} : vector<16x8xf32>, vector<8x384xf32>, vector<16x384xf32> -> vector<16x384xf32>
    %24 = arith.addf %18, %23 : vector<16x384xf32>
    %c4 = arith.constant 4 : index
    %c0_20 = arith.constant 0 : index
    %c0_21 = arith.constant 0 : index
    %25 = vector.load %arg2[%c4, %c0_20, %c0_21] : memref<9x16x8xf32, #tpu.memory_space<vmem>>, vector<1x16x8xf32>
    %26 = vector.shape_cast %25 : vector<1x16x8xf32> to vector<16x8xf32>
    %c0_22 = arith.constant 0 : index
    %c0_23 = arith.constant 0 : index
    %c19 = arith.constant 19 : index
    %27 = vector.load %arg1[%c0_22, %c0_23, %c19] : memref<1x8x512xf32, #tpu.memory_space<vmem>>, vector<1x8x384xf32>
    %28 = vector.shape_cast %27 : vector<1x8x384xf32> to vector<8x384xf32>
    %cst_24 = arith.constant dense<0.000000e+00> : vector<16x384xf32>
    %29 = tpu.matmul %26, %28, %cst_24 {dimension_numbers = #tpu.dot_dimension_numbers<[1], [0], [0], [1], [0, 0, 1, 1], [], []>} : vector<16x8xf32>, vector<8x384xf32>, vector<16x384xf32> -> vector<16x384xf32>
    %30 = arith.addf %24, %29 : vector<16x384xf32>
    %c5 = arith.constant 5 : index
    %c0_25 = arith.constant 0 : index
    %c0_26 = arith.constant 0 : index
    %31 = vector.load %arg2[%c5, %c0_25, %c0_26] : memref<9x16x8xf32, #tpu.memory_space<vmem>>, vector<1x16x8xf32>
    %32 = vector.shape_cast %31 : vector<1x16x8xf32> to vector<16x8xf32>
    %c0_27 = arith.constant 0 : index
    %c0_28 = arith.constant 0 : index
    %c18 = arith.constant 18 : index
    %33 = vector.load %arg1[%c0_27, %c0_28, %c18] : memref<1x8x512xf32, #tpu.memory_space<vmem>>, vector<1x8x384xf32>
    %34 = vector.shape_cast %33 : vector<1x8x384xf32> to vector<8x384xf32>
    %cst_29 = arith.constant dense<0.000000e+00> : vector<16x384xf32>
    %35 = tpu.matmul %32, %34, %cst_29 {dimension_numbers = #tpu.dot_dimension_numbers<[1], [0], [0], [1], [0, 0, 1, 1], [], []>} : vector<16x8xf32>, vector<8x384xf32>, vector<16x384xf32> -> vector<16x384xf32>
    %36 = arith.addf %30, %35 : vector<16x384xf32>
    %c6 = arith.constant 6 : index
    %c0_30 = arith.constant 0 : index
    %c0_31 = arith.constant 0 : index
    %37 = vector.load %arg2[%c6, %c0_30, %c0_31] : memref<9x16x8xf32, #tpu.memory_space<vmem>>, vector<1x16x8xf32>
    %38 = vector.shape_cast %37 : vector<1x16x8xf32> to vector<16x8xf32>
    %c0_32 = arith.constant 0 : index
    %c0_33 = arith.constant 0 : index
    %c2_34 = arith.constant 2 : index
    %39 = vector.load %arg1[%c0_32, %c0_33, %c2_34] : memref<1x8x512xf32, #tpu.memory_space<vmem>>, vector<1x8x384xf32>
    %40 = vector.shape_cast %39 : vector<1x8x384xf32> to vector<8x384xf32>
    %cst_35 = arith.constant dense<0.000000e+00> : vector<16x384xf32>
    %41 = tpu.matmul %38, %40, %cst_35 {dimension_numbers = #tpu.dot_dimension_numbers<[1], [0], [0], [1], [0, 0, 1, 1], [], []>} : vector<16x8xf32>, vector<8x384xf32>, vector<16x384xf32> -> vector<16x384xf32>
    %42 = arith.addf %36, %41 : vector<16x384xf32>
    %c7 = arith.constant 7 : index
    %c0_36 = arith.constant 0 : index
    %c0_37 = arith.constant 0 : index
    %43 = vector.load %arg2[%c7, %c0_36, %c0_37] : memref<9x16x8xf32, #tpu.memory_space<vmem>>, vector<1x16x8xf32>
    %44 = vector.shape_cast %43 : vector<1x16x8xf32> to vector<16x8xf32>
    %c0_38 = arith.constant 0 : index
    %c0_39 = arith.constant 0 : index
    %c1_40 = arith.constant 1 : index
    %45 = vector.load %arg1[%c0_38, %c0_39, %c1_40] : memref<1x8x512xf32, #tpu.memory_space<vmem>>, vector<1x8x384xf32>
    %46 = vector.shape_cast %45 : vector<1x8x384xf32> to vector<8x384xf32>
    %cst_41 = arith.constant dense<0.000000e+00> : vector<16x384xf32>
    %47 = tpu.matmul %44, %46, %cst_41 {dimension_numbers = #tpu.dot_dimension_numbers<[1], [0], [0], [1], [0, 0, 1, 1], [], []>} : vector<16x8xf32>, vector<8x384xf32>, vector<16x384xf32> -> vector<16x384xf32>
    %48 = arith.addf %42, %47 : vector<16x384xf32>
    %c8 = arith.constant 8 : index
    %c0_42 = arith.constant 0 : index
    %c0_43 = arith.constant 0 : index
    %49 = vector.load %arg2[%c8, %c0_42, %c0_43] : memref<9x16x8xf32, #tpu.memory_space<vmem>>, vector<1x16x8xf32>
    %50 = vector.shape_cast %49 : vector<1x16x8xf32> to vector<16x8xf32>
    %c0_44 = arith.constant 0 : index
    %c0_45 = arith.constant 0 : index
    %c0_46 = arith.constant 0 : index
    %51 = vector.load %arg1[%c0_44, %c0_45, %c0_46] : memref<1x8x512xf32, #tpu.memory_space<vmem>>, vector<1x8x384xf32>
    %52 = vector.shape_cast %51 : vector<1x8x384xf32> to vector<8x384xf32>
    %cst_47 = arith.constant dense<0.000000e+00> : vector<16x384xf32>
    %53 = tpu.matmul %50, %52, %cst_47 {dimension_numbers = #tpu.dot_dimension_numbers<[1], [0], [0], [1], [0, 0, 1, 1], [], []>} : vector<16x8xf32>, vector<8x384xf32>, vector<16x384xf32> -> vector<16x384xf32>
    %54 = arith.addf %48, %53 : vector<16x384xf32>
    %c0_48 = arith.constant 0 : index
    %c0_49 = arith.constant 0 : index
    %c0_50 = arith.constant 0 : index
    %55 = vector.load %arg4[%c0_48, %c0_49, %c0_50] : memref<1x16x384xf32, #tpu.memory_space<vmem>>, vector<1x16x384xf32>
    %56 = vector.shape_cast %55 : vector<1x16x384xf32> to vector<16x384xf32>
    %57 = vector.shape_cast %54 : vector<16x384xf32> to vector<1x16x384xf32>
    tpu.vector_store %arg4[%c0_48, %c0_49, %c0_50], %57 {strides = array<i32>} : memref<1x16x384xf32, #tpu.memory_space<vmem>>, vector<1x16x384xf32>,
    %c0_51 = arith.constant 0 : index
    %c0_52 = arith.constant 0 : index
    %58 = vector.load %arg3[%c0_51, %c0_52] : memref<1x384xf32, #tpu.memory_space<vmem>>, vector<1x384xf32>
    %59 = vector.broadcast %58 : vector<1x384xf32> to vector<16x384xf32>
    %60 = arith.mulf %54, %59 : vector<16x384xf32>
    %cst_53 = arith.constant dense<0.000000e+00> : vector<16xf32>
    %61 = vector.multi_reduction <add>, %60, %cst_53 [1] : vector<16x384xf32> to vector<16xf32>
    %62 = vector.shape_cast %61 : vector<16xf32> to vector<16x1xf32>
    %c0_54 = arith.constant 0 : index
    %c0_55 = arith.constant 0 : index
    %c0_56 = arith.constant 0 : index
    %63 = vector.load %arg5[%c0_54, %c0_55, %c0_56] : memref<1x16x1xf32, #tpu.memory_space<vmem>>, vector<1x16x1xf32>
    %64 = vector.shape_cast %63 : vector<1x16x1xf32> to vector<16x1xf32>
    %65 = vector.shape_cast %62 : vector<16x1xf32> to vector<1x16x1xf32>
    tpu.vector_store %arg5[%c0_54, %c0_55, %c0_56], %65 {strides = array<i32>} : memref<1x16x1xf32, #tpu.memory_space<vmem>>, vector<1x16x1xf32>,
    %66 = arith.mulf %60, %54 : vector<16x384xf32>
    %cst_57 = arith.constant dense<0.000000e+00> : vector<16xf32>
    %67 = vector.multi_reduction <add>, %66, %cst_57 [1] : vector<16x384xf32> to vector<16xf32>
    %68 = vector.shape_cast %67 : vector<16xf32> to vector<16x1xf32>
    %c0_58 = arith.constant 0 : index
    %c0_59 = arith.constant 0 : index
    %c0_60 = arith.constant 0 : index
    %69 = vector.load %arg6[%c0_58, %c0_59, %c0_60] : memref<1x16x1xf32, #tpu.memory_space<vmem>>, vector<1x16x1xf32>
    %70 = vector.shape_cast %69 : vector<1x16x1xf32> to vector<16x1xf32>
    %71 = vector.shape_cast %68 : vector<16x1xf32> to vector<1x16x1xf32>
    tpu.vector_store %arg6[%c0_58, %c0_59, %c0_60], %71 {strides = array<i32>} : memref<1x16x1xf32, #tpu.memory_space<vmem>>, vector<1x16x1xf32>,
    return
  }
  func.func @transform_0(%arg0: i32) -> (i32, i32, i32) {
    %c0_i32 = arith.constant 0 : i32
    %c0_i32_0 = arith.constant 0 : i32
    %c0_i32_1 = arith.constant 0 : i32
    return %arg0, %c0_i32, %c0_i32_0 : i32, i32, i32
  }
  func.func @transform_1(%arg0: i32) -> (i32, i32, i32) {
    %c0_i32 = arith.constant 0 : i32
    %c0_i32_0 = arith.constant 0 : i32
    %c0_i32_1 = arith.constant 0 : i32
    %c0_i32_2 = arith.constant 0 : i32
    return %c0_i32, %c0_i32_0, %c0_i32_1 : i32, i32, i32
  }
  func.func @transform_2(%arg0: i32) -> (i32, i32) {
    %c0_i32 = arith.constant 0 : i32
    %c0_i32_0 = arith.constant 0 : i32
    %c0_i32_1 = arith.constant 0 : i32
    return %c0_i32, %c0_i32_0 : i32, i32
  }
  func.func @transform_3(%arg0: i32) -> (i32, i32, i32) {
    %c0_i32 = arith.constant 0 : i32
    %c0_i32_0 = arith.constant 0 : i32
    %c0_i32_1 = arith.constant 0 : i32
    return %arg0, %c0_i32, %c0_i32_0 : i32, i32, i32
  }
  func.func @transform_4(%arg0: i32) -> (i32, i32, i32) {
    %c0_i32 = arith.constant 0 : i32
    %c0_i32_0 = arith.constant 0 : i32
    %c0_i32_1 = arith.constant 0 : i32
    return %arg0, %c0_i32, %c0_i32_0 : i32, i32, i32
  }
  func.func @transform_5(%arg0: i32) -> (i32, i32, i32) {
    %c0_i32 = arith.constant 0 : i32
    %c0_i32_0 = arith.constant 0 : i32
    %c0_i32_1 = arith.constant 0 : i32
    return %arg0, %c0_i32, %c0_i32_0 : i32, i32, i32
  }
}

</mosaic_0001>

<llo_original>
// kernel: tpu_custom_call.1
$region0: #{tpu_custom_call.1}
  #allocation0 [shape = 'u32[]', space=smem, size = 0x4, offset = 0x4, fixed_abs, tag = 'smem constant byte address 0x4 - core index']
  #allocation1 [shape = 'u32[144,128]{1,0:T(1,128)}', space=vmem, size = 0x12000, scoped, tag = 'internal scratch']
  %s0 = inlined_call_operand.vmem [shape: f32[2,8,512], index: 0, kind: input, shape index: {}]
  %s1 = inlined_call_operand.vmem [shape: f32[9,16,8], index: 1, kind: input, shape index: {}]
  %s2 = inlined_call_operand.vmem [shape: f32[1,384], index: 2, kind: input, shape index: {}]
  %s3 = inlined_call_operand.hbm [shape: f32[2,16,384], index: 3, kind: output, shape index: {0}]
  %s4 = inlined_call_operand.vmem [shape: f32[2,16,1], index: 4, kind: output, shape index: {1}]
  %s5 = inlined_call_operand.vmem [shape: f32[2,16,1], index: 5, kind: output, shape index: {2}]
  %6 = xla_tuple %s3, %s4, %s5
  %s7 = sld [smem:[#allocation0]]
  $region61: #{tpu_custom_call.1} parent=0
    _
  %s9 = ssub.s32 1, %s7
  %s10 = scalar_select 0, %s9, %s7
  $region1: #{tpu_custom_call.1} parent=0
    #allocation2 [shape = 'u8[49152]{0}', space=vmem, size = 0xc000, scoped, tag = 'output window, operand 0']
    #allocation3 [shape = 's32[2]{0}', space=sflag, size = 0x8, scoped, tag = 'scoped memory for tpu_custom_call.1']
    %11 = vsyncpa [#allocation3], 0
    %s12 = scalar_lea.sflag [#allocation3], 1
    %13 = vsyncpa %s12, 0
    loop: start=0, step=1, limit=4
    $region2: #{tpu_custom_call.1} parent=1 // loop_pre_header
      _
    $region3: #{tpu_custom_call.1} parent=1 // loop_header
      %s15 = sphi 0, %s19
      %p16 = scmp.ge.s32.totalorder %s15, 4
      %s25 = sphi 0, %s27
      %s28 = sphi 0, %s25
      %s29 = sphi 0, %s28
      %s45 = sphi 0, %s29
      %s49 = sphi 0, %s49
      %s51 = sphi 0, %s49
      %s52 = sphi 0, %s51
      %s66 = sphi 0, %s52
      %s70 = sphi 0, %s70
      %s72 = sphi 0, %s70
      %s73 = sphi 0, %s72
      %s87 = sphi 0, %s73
      %s93 = sphi 0, %s95
      %s96 = sphi 0, %s93
      %s97 = sphi 0, %s96
      %s113 = sphi 0, %s97
      %s119 = sphi 0, %s121
      %s122 = sphi 0, %s119
      %s123 = sphi 0, %s122
      %s139 = sphi 0, %s123
      %s145 = sphi 0, %s147
      %s148 = sphi 0, %s145
      %s149 = sphi 0, %s148
      %s165 = sphi 0, %s149
    $region4: #{tpu_custom_call.1} parent=1 // loop_header_branch
      %18 = sbr.rel (%p16) target = $region8
    $region5: #{tpu_custom_call.1} parent=1 // loop_body
      %s20 = ssub.s32 %s15, 1
      %s21 = ssub.s32 %s15, 2
      %s22 = sadd.s32 %s15, 1
      %s23 = ssub.s32 %s15, %s22
      %p24 = scmp.eq.s32.totalorder %s23, 0
      %s26 = sadd.s32 %s25, 1
      %s27 = scalar_select %p24, %s25, %s26
      %p30 = pneg %p24
      %p31 = scmp.eq.s32.totalorder %s15, 1
      %p32 = por %p30, %p31
      %p33 = scmp.ne.s32.totalorder %s25, %s28
      %p34 = scmp.eq.s32.totalorder %s15, 0
      %p35 = por %p33, %p34
      %p36 = scmp.ne.s32.totalorder %s25, %s28
      %p37 = scmp.eq.s32.totalorder %s20, 1
      %p38 = por %p36, %p37
      %p39 = scmp.ne.s32.totalorder %s28, %s29
      %p40 = scmp.eq.s32.totalorder %s20, 0
      %p41 = por %p39, %p40
      %p42 = scmp.ne.s32.totalorder %s28, %s29
      %p43 = scmp.eq.s32.totalorder %s21, 1
      %p44 = por %p42, %p43
      %p46 = scmp.ne.s32.totalorder %s29, %s45
      %p47 = scmp.eq.s32.totalorder %s21, 0
      %p48 = por %p46, %p47
      %s50 = sadd.s32 %s49, 1
      %p53 = scmp.eq.s32.totalorder %s15, 1
      %p54 = scmp.ne.s32.totalorder %s49, %s51
      %p55 = scmp.eq.s32.totalorder %s15, 0
      %p56 = por %p54, %p55
      %p57 = scmp.ne.s32.totalorder %s49, %s51
      %p58 = scmp.eq.s32.totalorder %s20, 1
      %p59 = por %p57, %p58
      %p60 = scmp.ne.s32.totalorder %s51, %s52
      %p61 = scmp.eq.s32.totalorder %s20, 0
      %p62 = por %p60, %p61
      %p63 = scmp.ne.s32.totalorder %s51, %s52
      %p64 = scmp.eq.s32.totalorder %s21, 1
      %p65 = por %p63, %p64
      %p67 = scmp.ne.s32.totalorder %s52, %s66
      %p68 = scmp.eq.s32.totalorder %s21, 0
      %p69 = por %p67, %p68
      %s71 = sadd.s32 %s70, 1
      %p74 = scmp.eq.s32.totalorder %s15, 1
      %p75 = scmp.ne.s32.totalorder %s70, %s72
      %p76 = scmp.eq.s32.totalorder %s15, 0
      %p77 = por %p75, %p76
      %p78 = scmp.ne.s32.totalorder %s70, %s72
      %p79 = scmp.eq.s32.totalorder %s20, 1
      %p80 = por %p78, %p79
      %p81 = scmp.ne.s32.totalorder %s72, %s73
      %p82 = scmp.eq.s32.totalorder %s20, 0
      %p83 = por %p81, %p82
      %p84 = scmp.ne.s32.totalorder %s72, %s73
      %p85 = scmp.eq.s32.totalorder %s21, 1
      %p86 = por %p84, %p85
      %p88 = scmp.ne.s32.totalorder %s73, %s87
      %p89 = scmp.eq.s32.totalorder %s21, 0
      %p90 = por %p88, %p89
      %s91 = ssub.s32 %s15, %s22
      %p92 = scmp.eq.s32.totalorder %s91, 0
      %s94 = sadd.s32 %s93, 1
      %s95 = scalar_select %p92, %s93, %s94
      %p98 = pneg %p92
      %p99 = scmp.eq.s32.totalorder %s15, 1
      %p100 = por %p98, %p99
      %p101 = scmp.ne.s32.totalorder %s93, %s96
      %p102 = scmp.eq.s32.totalorder %s15, 0
      %p103 = por %p101, %p102
      %p104 = scmp.ne.s32.totalorder %s93, %s96
      %p105 = scmp.eq.s32.totalorder %s20, 1
      %p106 = por %p104, %p105
      %p107 = scmp.ne.s32.totalorder %s96, %s97
      %p108 = scmp.eq.s32.totalorder %s20, 0
      %p109 = por %p107, %p108
      %p110 = scmp.ne.s32.totalorder %s96, %s97
      %p111 = scmp.eq.s32.totalorder %s21, 1
      %p112 = por %p110, %p111
      %p114 = scmp.ne.s32.totalorder %s97, %s113
      %p115 = scmp.eq.s32.totalorder %s21, 0
      %p116 = por %p114, %p115
      %s117 = ssub.s32 %s15, %s22
      %p118 = scmp.eq.s32.totalorder %s117, 0
      %s120 = sadd.s32 %s119, 1
      %s121 = scalar_select %p118, %s119, %s120
      %p124 = pneg %p118
      %p125 = scmp.eq.s32.totalorder %s15, 1
      %p126 = por %p124, %p125
      %p127 = scmp.ne.s32.totalorder %s119, %s122
      %p128 = scmp.eq.s32.totalorder %s15, 0
      %p129 = por %p127, %p128
      %p130 = scmp.ne.s32.totalorder %s119, %s122
      %p131 = scmp.eq.s32.totalorder %s20, 1
      %p132 = por %p130, %p131
      %p133 = scmp.ne.s32.totalorder %s122, %s123
      %p134 = scmp.eq.s32.totalorder %s20, 0
      %p135 = por %p133, %p134
      %p136 = scmp.ne.s32.totalorder %s122, %s123
      %p137 = scmp.eq.s32.totalorder %s21, 1
      %p138 = por %p136, %p137
      %p140 = scmp.ne.s32.totalorder %s123, %s139
      %p141 = scmp.eq.s32.totalorder %s21, 0
      %p142 = por %p140, %p141
      %s143 = ssub.s32 %s15, %s22
      %p144 = scmp.eq.s32.totalorder %s143, 0
      %s146 = sadd.s32 %s145, 1
      %s147 = scalar_select %p144, %s145, %s146
      %p150 = pneg %p144
      %p151 = scmp.eq.s32.totalorder %s15, 1
      %p152 = por %p150, %p151
      %p153 = scmp.ne.s32.totalorder %s145, %s148
      %p154 = scmp.eq.s32.totalorder %s15, 0
      %p155 = por %p153, %p154
      %p156 = scmp.ne.s32.totalorder %s145, %s148
      %p157 = scmp.eq.s32.totalorder %s20, 1
      %p158 = por %p156, %p157
      %p159 = scmp.ne.s32.totalorder %s148, %s149
      %p160 = scmp.eq.s32.totalorder %s20, 0
      %p161 = por %p159, %p160
      %p162 = scmp.ne.s32.totalorder %s148, %s149
      %p163 = scmp.eq.s32.totalorder %s21, 1
      %p164 = por %p162, %p163
      %p166 = scmp.ne.s32.totalorder %s149, %s165
      %p167 = scmp.eq.s32.totalorder %s21, 0
      %p168 = por %p166, %p167
      %p169 = scmp.le.s32.totalorder 1, %s15
      %p170 = scmp.lt.s32.totalorder %s15, 3
      %p171 = pnand %p169, %p170
      %p172 = pneg %p171
      // Predicated region
      $region9: #{tpu_custom_call.1} parent=5 // pred_check
        _
      $region10: #{tpu_custom_call.1} parent=5 // pred_check_branch
        %174 = sbr.rel (%p171) target = $region12
      $region11: #{tpu_custom_call.1} parent=5 // pred_region
        %s175 = ssub.s32 %s15, 1
        // Predicated region
        $region13: #{tpu_custom_call.1} parent=11 // pred_check
          %p176 = pneg %p62
        $region14: #{tpu_custom_call.1} parent=11 // pred_check_branch
          %178 = sbr.rel (%p176) target = $region16
        $region15: #{tpu_custom_call.1} parent=11 // pred_region
          _
        $region16: #{tpu_custom_call.1} parent=11 // pred_fallthru
          _
        // Predicated region
        $region17: #{tpu_custom_call.1} parent=11 // pred_check
          %p179 = pneg %p83
        $region18: #{tpu_custom_call.1} parent=11 // pred_check_branch
          %181 = sbr.rel (%p179) target = $region20
        $region19: #{tpu_custom_call.1} parent=11 // pred_region
          _
        $region20: #{tpu_custom_call.1} parent=11 // pred_fallthru
          _
      $region12: #{tpu_custom_call.1} parent=5 // pred_fallthru
        _
      %p182 = scmp.lt.s32.totalorder %s15, 2
      // Predicated region
      $region21: #{tpu_custom_call.1} parent=5 // pred_check
        %p183 = pneg %p182
      $region22: #{tpu_custom_call.1} parent=5 // pred_check_branch
        %185 = sbr.rel (%p183) target = $region24
      $region23: #{tpu_custom_call.1} parent=5 // pred_region
        // Predicated region
        $region25: #{tpu_custom_call.1} parent=23 // pred_check
          %p186 = pneg %p35
        $region26: #{tpu_custom_call.1} parent=23 // pred_check_branch
          %188 = sbr.rel (%p186) target = $region28
        $region27: #{tpu_custom_call.1} parent=23 // pred_region
          %p189 = scmp.lt.s32.totalorder %s15, 1
          %s190 = scalar_select %p189, %s15, 1
          %s191 = smul.addr %s190, 4
          %s192 = smul.addr %s191, 8
          %s193 = scalar_lea.vmem %s0, %s192
        $region28: #{tpu_custom_call.1} parent=23 // pred_fallthru
          _
      $region24: #{tpu_custom_call.1} parent=5 // pred_fallthru
        _
      %p194 = scmp.le.s32.totalorder 1, %s15
      %p195 = scmp.lt.s32.totalorder %s15, 3
      %p196 = pnand %p194, %p195
      %p197 = pneg %p196
      // Predicated region
      $region29: #{tpu_custom_call.1} parent=5 // pred_check
        _
      $region30: #{tpu_custom_call.1} parent=5 // pred_check_branch
        %199 = sbr.rel (%p196) target = $region32
      $region31: #{tpu_custom_call.1} parent=5 // pred_region
        %s200 = ssub.s32 %s15, 1
        %p201 = scmp.lt.s32.totalorder %s20, 1
        %s202 = scalar_select %p201, %s20, 1
        %s203 = smul.addr %s202, 4
        %s204 = smul.addr %s203, 8
        %s205 = scalar_lea.vmem %s0, %s204
        %p206 = pneg %p41
        %p207 = pneg %p38
        %p208 = pneg %p62
        %p209 = pneg %p59
        %p210 = pneg %p83
        %p211 = pneg %p80
        %p212 = pneg %p109
        %p213 = pneg %p106
        %s214 = sand.u32 %s96, 1
        %s215 = scalar_lea.sflag [#allocation3], %s214
        %s216 = sand.u32 %s96, 1
        %s217 = smul.addr %s216, 48
        %s218 = scalar_lea.vmem [#allocation2], %s217
        %p219 = pneg %p135
        %p220 = pneg %p132
        %p221 = scmp.lt.s32.totalorder %s20, 1
        %s222 = scalar_select %p221, %s20, 1
        %s223 = smul.addr %s222, 2
        %s224 = smul.addr %s223, 8
        %s225 = scalar_lea.vmem %s4, %s224
        %p226 = pneg %p161
        %p227 = pneg %p158
        %p228 = scmp.lt.s32.totalorder %s20, 1
        %s229 = scalar_select %p228, %s20, 1
        %s230 = smul.addr %s229, 2
        %s231 = smul.addr %s230, 8
        %s232 = scalar_lea.vmem %s5, %s231
        %p233 = scmp.lt.s32.totalorder %s20, 1
        %s234 = scalar_select %p233, %s20, 1
        %s235 = smul.addr %s234, 4
        %s236 = smul.addr %s235, 8
        %s237 = scalar_lea.vmem %s0, %s236
        %p238 = scmp.lt.s32.totalorder %s20, 1
        %s239 = scalar_select %p238, %s20, 1
        %s240 = smul.addr %s239, 2
        %s241 = smul.addr %s240, 8
        %s242 = scalar_lea.vmem %s4, %s241
        %p243 = scmp.lt.s32.totalorder %s20, 1
        %s244 = scalar_select %p243, %s20, 1
        %s245 = smul.addr %s244, 2
        %s246 = smul.addr %s245, 8
        %s247 = scalar_lea.vmem %s5, %s246
        %v248 = vld [vmem:[%s1] sm:$0xff]
        %v249 = vld [vmem:[%s1 + $0x8] sm:$0xff]
        %v250 = vld [vmem:[%s237] sm:$0xff]
        %v251 = vld [vmem:[%s237 + $0x8] sm:$0xff]
        %v252 = vld [vmem:[%s237 + $0x10] sm:$0xff]
        %v253 = vld [vmem:[%s237 + $0x18] sm:$0xff]
        %s254 = scalar_lea.vmem %s1, 16
        %v255 = vld [vmem:[%s254] sm:$0xff]
        %v256 = vld [vmem:[%s254 + $0x8] sm:$0xff]
        %261 = vrot.lane.b32.xlu0 %v250, 91
        %v262 = vpop.permute.xlu0 %261
        %263 = vrot.lane.b32.xlu0 %v251, 91
        %v264 = vpop.permute.xlu0 %263
        %265 = vrot.lane.b32.xlu0 %v252, 91
        %v266 = vpop.permute.xlu0 %265
        %267 = vrot.lane.b32.xlu0 %v253, 91
        %v268 = vpop.permute.xlu0 %267
        %vm269 = vcmask 744448
        %v270 = vsel %vm269, %v262, %v264
        %v271 = vsel %vm269, %v264, %v266
        %v272 = vsel %vm269, %v266, %v268
        %vm276 = vcmask 64512
        %v278 = vsel %vm276, %v255, 0
        %v281 = vsel %vm276, %v256, 0
        %283 = vmatprep.subr.mxu0 %v271
        %284 = vmatpush1.msra.mxu0 %v270
        %285 = vmatprep.subr.mxu0 0.0
        %286 = vmatpush1.msra.mxu0 0.0
        %287 = vmatprep.subr.mxu0 0.0
        %288 = vmatpush1.msra.mxu0 0.0
        %289 = vmatprep.subr.mxu0 0.0
        %290 = vmatpush1.msra.mxu0 0.0
        %291 = vmatprep.subr.mxu0 0.0
        %292 = vmatpush1.msra.mxu0 0.0
        %293 = vmatprep.subr.mxu0 0.0
        %294 = vmatpush1.msra.mxu0 0.0
        %295 = vmatprep.subr.mxu0 0.0
        %296 = vmatpush1.msra.mxu0 0.0
        %297 = vmatprep.subr.mxu0 0.0
        %298 = vmatpush1.msra.mxu0 0.0
        %299 = vmatprep.subr.mxu0 0.0
        %300 = vmatpush1.msra.mxu0 0.0
        %301 = vmatprep.subr.mxu0 0.0
        %302 = vmatpush1.msra.mxu0 0.0
        %303 = vmatprep.subr.mxu0 0.0
        %304 = vmatpush1.msra.mxu0 0.0
        %305 = vmatprep.subr.mxu0 0.0
        %306 = vmatpush1.msra.mxu0 0.0
        %307 = vmatprep.subr.mxu0 0.0
        %308 = vmatpush1.msra.mxu0 0.0
        %309 = vmatprep.subr.mxu0 0.0
        %310 = vmatpush1.msra.mxu0 0.0
        %311 = vmatprep.subr.mxu0 0.0
        %312 = vmatpush1.msra.mxu0 0.0
        %313 = vmatprep.subr.mxu0 0.0
        %314 = vmatpush1.msra.mxu0 0.0
        %315 = vmatprep.subr.mxu0 0.0
        %316 = vmatpush1.msra.mxu0 0.0
        %317 = vmatprep.subr.mxu0 0.0
        %318 = vmatpush1.msra.mxu0 0.0
        %319 = vmatprep.subr.mxu0 0.0
        %320 = vmatpush1.msra.mxu0 0.0
        %321 = vmatprep.subr.mxu0 0.0
        %322 = vmatpush1.msra.mxu0 0.0
        %323 = vmatprep.subr.mxu0 0.0
        %324 = vmatpush1.msra.mxu0 0.0
        %325 = vmatprep.subr.mxu0 0.0
        %326 = vmatpush1.msra.mxu0 0.0
        %327 = vmatprep.subr.mxu0 0.0
        %328 = vmatpush1.msra.mxu0 0.0
        %329 = vmatprep.subr.mxu0 0.0
        %330 = vmatpush1.msra.mxu0 0.0
        %331 = vmatprep.subr.mxu0 0.0
        %332 = vmatpush1.msra.mxu0 0.0
        %333 = vmatprep.subr.mxu0 0.0
        %334 = vmatpush1.msra.mxu0 0.0
        %335 = vmatprep.subr.mxu0 0.0
        %336 = vmatpush1.msra.mxu0 0.0
        %337 = vmatprep.subr.mxu0 0.0
        %338 = vmatpush1.msra.mxu0 0.0
        %339 = vmatprep.subr.mxu0 0.0
        %340 = vmatpush1.msra.mxu0 0.0
        %341 = vmatprep.subr.mxu0 0.0
        %342 = vmatpush1.msra.mxu0 0.0
        %343 = vmatprep.subr.mxu0 0.0
        %344 = vmatpush1.msra.mxu0 0.0
        %345 = vmatprep.subr.mxu0 0.0
        %346 = vmatpush1.msra.mxu0 0.0
        %347 = vmatprep.mubr.f32.mxu0 0.0
        %348 = vmatmul.mubr.f32.gmra.mrb[0].mxu0 %v278
        %v349 = vpop.f32.mrb[0].mxu0
        %v350 = vadd.f32 0.0, %v349
        %v351 = vpop.f32.mrb[0].mxu0
        %v352 = vadd.f32 0.0, %v351
        %353 = vmatprep.mubr.f32.mxu0 0.0
        %354 = vmatmul.mubr.f32.gmra.mrb[0].mxu0 %v281
        %v355 = vpop.f32.mrb[0].mxu0
        %v356 = vadd.f32 0.0, %v355
        %v357 = vpop.f32.mrb[0].mxu0
        %v358 = vadd.f32 0.0, %v357
        %359 = vdwg.mxu0
        %360 = vmatprep.subr.mxu0 0.0
        %361 = vmatpush1.msra.mxu0 %v272
        %362 = vmatprep.subr.mxu0 0.0
        %363 = vmatpush1.msra.mxu0 0.0
        %364 = vmatprep.subr.mxu0 0.0
        %365 = vmatpush1.msra.mxu0 0.0
        %366 = vmatprep.subr.mxu0 0.0
        %367 = vmatpush1.msra.mxu0 0.0
        %368 = vmatprep.subr.mxu0 0.0
        %369 = vmatpush1.msra.mxu0 0.0
        %370 = vmatprep.subr.mxu0 0.0
        %371 = vmatpush1.msra.mxu0 0.0
        %372 = vmatprep.subr.mxu0 0.0
        %373 = vmatpush1.msra.mxu0 0.0
        %374 = vmatprep.subr.mxu0 0.0
        %375 = vmatpush1.msra.mxu0 0.0
        %376 = vmatprep.subr.mxu0 0.0
        %377 = vmatpush1.msra.mxu0 0.0
        %378 = vmatprep.subr.mxu0 0.0
        %379 = vmatpush1.msra.mxu0 0.0
        %380 = vmatprep.subr.mxu0 0.0
        %381 = vmatpush1.msra.mxu0 0.0
        %382 = vmatprep.subr.mxu0 0.0
        %383 = vmatpush1.msra.mxu0 0.0
        %384 = vmatprep.subr.mxu0 0.0
        %385 = vmatpush1.msra.mxu0 0.0
        %386 = vmatprep.subr.mxu0 0.0
        %387 = vmatpush1.msra.mxu0 0.0
        %388 = vmatprep.subr.mxu0 0.0
        %389 = vmatpush1.msra.mxu0 0.0
        %390 = vmatprep.subr.mxu0 0.0
        %391 = vmatpush1.msra.mxu0 0.0
        %392 = vmatprep.subr.mxu0 0.0
        %393 = vmatpush1.msra.mxu0 0.0
        %394 = vmatprep.subr.mxu0 0.0
        %395 = vmatpush1.msra.mxu0 0.0
        %396 = vmatprep.subr.mxu0 0.0
        %397 = vmatpush1.msra.mxu0 0.0
        %398 = vmatprep.subr.mxu0 0.0
        %399 = vmatpush1.msra.mxu0 0.0
        %400 = vmatprep.subr.mxu0 0.0
        %401 = vmatpush1.msra.mxu0 0.0
        %402 = vmatprep.subr.mxu0 0.0
        %403 = vmatpush1.msra.mxu0 0.0
        %404 = vmatprep.subr.mxu0 0.0
        %405 = vmatpush1.msra.mxu0 0.0
        %406 = vmatprep.subr.mxu0 0.0
        %407 = vmatpush1.msra.mxu0 0.0
        %408 = vmatprep.subr.mxu0 0.0
        %409 = vmatpush1.msra.mxu0 0.0
        %410 = vmatprep.subr.mxu0 0.0
        %411 = vmatpush1.msra.mxu0 0.0
        %412 = vmatprep.subr.mxu0 0.0
        %413 = vmatpush1.msra.mxu0 0.0
        %414 = vmatprep.subr.mxu0 0.0
        %415 = vmatpush1.msra.mxu0 0.0
        %416 = vmatprep.subr.mxu0 0.0
        %417 = vmatpush1.msra.mxu0 0.0
        %418 = vmatprep.subr.mxu0 0.0
        %419 = vmatpush1.msra.mxu0 0.0
        %420 = vmatprep.subr.mxu0 0.0
        %421 = vmatpush1.msra.mxu0 0.0
        %422 = vmatprep.subr.mxu0 0.0
        %423 = vmatpush1.msra.mxu0 0.0
        %424 = vmatprep.mubr.f32.mxu0 0.0
        %425 = vmatmul.mubr.f32.gmra.mrb[0].mxu0 %v278
        %v426 = vpop.f32.mrb[0].mxu0
        %v427 = vadd.f32 0.0, %v426
        %v428 = vpop.f32.mrb[0].mxu0
        %429 = vmatprep.mubr.f32.mxu0 0.0
        %430 = vmatmul.mubr.f32.gmra.mrb[0].mxu0 %v281
        %v431 = vpop.f32.mrb[0].mxu0
        %v432 = vadd.f32 0.0, %v431
        %v433 = vpop.f32.mrb[0].mxu0
        %434 = vdwg.mxu0
        %435 = vrot.lane.b32.xlu0 %v250, 90
        %v436 = vpop.permute.xlu0 %435
        %437 = vrot.lane.b32.xlu0 %v251, 90
        %v438 = vpop.permute.xlu0 %437
        %439 = vrot.lane.b32.xlu0 %v252, 90
        %v440 = vpop.permute.xlu0 %439
        %441 = vrot.lane.b32.xlu0 %v253, 90
        %v442 = vpop.permute.xlu0 %441
        %vm443 = vcmask 736256
        %v444 = vsel %vm443, %v436, %v438
        %v445 = vsel %vm443, %v438, %v440
        %v446 = vsel %vm443, %v440, %v442
        %v451 = vsel %vm276, %v248, 0
        %v454 = vsel %vm276, %v249, 0
        %456 = vmatprep.subr.mxu0 %v445
        %457 = vmatpush1.msra.mxu0 %v444
        %458 = vmatprep.subr.mxu0 0.0
        %459 = vmatpush1.msra.mxu0 0.0
        %460 = vmatprep.subr.mxu0 0.0
        %461 = vmatpush1.msra.mxu0 0.0
        %462 = vmatprep.subr.mxu0 0.0
        %463 = vmatpush1.msra.mxu0 0.0
        %464 = vmatprep.subr.mxu0 0.0
        %465 = vmatpush1.msra.mxu0 0.0
        %466 = vmatprep.subr.mxu0 0.0
        %467 = vmatpush1.msra.mxu0 0.0
        %468 = vmatprep.subr.mxu0 0.0
        %469 = vmatpush1.msra.mxu0 0.0
        %470 = vmatprep.subr.mxu0 0.0
        %471 = vmatpush1.msra.mxu0 0.0
        %472 = vmatprep.subr.mxu0 0.0
        %473 = vmatpush1.msra.mxu0 0.0
        %474 = vmatprep.subr.mxu0 0.0
        %475 = vmatpush1.msra.mxu0 0.0
        %476 = vmatprep.subr.mxu0 0.0
        %477 = vmatpush1.msra.mxu0 0.0
        %478 = vmatprep.subr.mxu0 0.0
        %479 = vmatpush1.msra.mxu0 0.0
        %480 = vmatprep.subr.mxu0 0.0
        %481 = vmatpush1.msra.mxu0 0.0
        %482 = vmatprep.subr.mxu0 0.0
        %483 = vmatpush1.msra.mxu0 0.0
        %484 = vmatprep.subr.mxu0 0.0
        %485 = vmatpush1.msra.mxu0 0.0
        %486 = vmatprep.subr.mxu0 0.0
        %487 = vmatpush1.msra.mxu0 0.0
        %488 = vmatprep.subr.mxu0 0.0
        %489 = vmatpush1.msra.mxu0 0.0
        %490 = vmatprep.subr.mxu0 0.0
        %491 = vmatpush1.msra.mxu0 0.0
        %492 = vmatprep.subr.mxu0 0.0
        %493 = vmatpush1.msra.mxu0 0.0
        %494 = vmatprep.subr.mxu0 0.0
        %495 = vmatpush1.msra.mxu0 0.0
        %496 = vmatprep.subr.mxu0 0.0
        %497 = vmatpush1.msra.mxu0 0.0
        %498 = vmatprep.subr.mxu0 0.0
        %499 = vmatpush1.msra.mxu0 0.0
        %500 = vmatprep.subr.mxu0 0.0
        %501 = vmatpush1.msra.mxu0 0.0
        %502 = vmatprep.subr.mxu0 0.0
        %503 = vmatpush1.msra.mxu0 0.0
        %504 = vmatprep.subr.mxu0 0.0
        %505 = vmatpush1.msra.mxu0 0.0
        %506 = vmatprep.subr.mxu0 0.0
        %507 = vmatpush1.msra.mxu0 0.0
        %508 = vmatprep.subr.mxu0 0.0
        %509 = vmatpush1.msra.mxu0 0.0
        %510 = vmatprep.subr.mxu0 0.0
        %511 = vmatpush1.msra.mxu0 0.0
        %512 = vmatprep.subr.mxu0 0.0
        %513 = vmatpush1.msra.mxu0 0.0
        %514 = vmatprep.subr.mxu0 0.0
        %515 = vmatpush1.msra.mxu0 0.0
        %516 = vmatprep.subr.mxu0 0.0
        %517 = vmatpush1.msra.mxu0 0.0
        %518 = vmatprep.subr.mxu0 0.0
        %519 = vmatpush1.msra.mxu0 0.0
        %520 = vmatprep.mubr.f32.mxu0 0.0
        %521 = vmatmul.mubr.f32.gmra.mrb[0].mxu0 %v451
        %v522 = vpop.f32.mrb[0].mxu0
        %v523 = vadd.f32 %v350, %v522
        %v524 = vpop.f32.mrb[0].mxu0
        %v525 = vadd.f32 %v352, %v524
        %526 = vmatprep.mubr.f32.mxu0 0.0
        %527 = vmatmul.mubr.f32.gmra.mrb[0].mxu0 %v454
        %v528 = vpop.f32.mrb[0].mxu0
        %v529 = vadd.f32 %v356, %v528
        %v530 = vpop.f32.mrb[0].mxu0
        %v531 = vadd.f32 %v358, %v530
        %532 = vdwg.mxu0
        %533 = vmatprep.subr.mxu0 0.0
        %534 = vmatpush1.msra.mxu0 %v446
        %535 = vmatprep.subr.mxu0 0.0
        %536 = vmatpush1.msra.mxu0 0.0
        %537 = vmatprep.subr.mxu0 0.0
        %538 = vmatpush1.msra.mxu0 0.0
        %539 = vmatprep.subr.mxu0 0.0
        %540 = vmatpush1.msra.mxu0 0.0
        %541 = vmatprep.subr.mxu0 0.0
        %542 = vmatpush1.msra.mxu0 0.0
        %543 = vmatprep.subr.mxu0 0.0
        %544 = vmatpush1.msra.mxu0 0.0
        %545 = vmatprep.subr.mxu0 0.0
        %546 = vmatpush1.msra.mxu0 0.0
        %547 = vmatprep.subr.mxu0 0.0
        %548 = vmatpush1.msra.mxu0 0.0
        %549 = vmatprep.subr.mxu0 0.0
        %550 = vmatpush1.msra.mxu0 0.0
        %551 = vmatprep.subr.mxu0 0.0
        %552 = vmatpush1.msra.mxu0 0.0
        %553 = vmatprep.subr.mxu0 0.0
        %554 = vmatpush1.msra.mxu0 0.0
        %555 = vmatprep.subr.mxu0 0.0
        %556 = vmatpush1.msra.mxu0 0.0
        %557 = vmatprep.subr.mxu0 0.0
        %558 = vmatpush1.msra.mxu0 0.0
        %559 = vmatprep.subr.mxu0 0.0
        %560 = vmatpush1.msra.mxu0 0.0
        %561 = vmatprep.subr.mxu0 0.0
        %562 = vmatpush1.msra.mxu0 0.0
        %563 = vmatprep.subr.mxu0 0.0
        %564 = vmatpush1.msra.mxu0 0.0
        %565 = vmatprep.subr.mxu0 0.0
        %566 = vmatpush1.msra.mxu0 0.0
        %567 = vmatprep.subr.mxu0 0.0
        %568 = vmatpush1.msra.mxu0 0.0
        %569 = vmatprep.subr.mxu0 0.0
        %570 = vmatpush1.msra.mxu0 0.0
        %571 = vmatprep.subr.mxu0 0.0
        %572 = vmatpush1.msra.mxu0 0.0
        %573 = vmatprep.subr.mxu0 0.0
        %574 = vmatpush1.msra.mxu0 0.0
        %575 = vmatprep.subr.mxu0 0.0
        %576 = vmatpush1.msra.mxu0 0.0
        %577 = vmatprep.subr.mxu0 0.0
        %578 = vmatpush1.msra.mxu0 0.0
        %579 = vmatprep.subr.mxu0 0.0
        %580 = vmatpush1.msra.mxu0 0.0
        %581 = vmatprep.subr.mxu0 0.0
        %582 = vmatpush1.msra.mxu0 0.0
        %583 = vmatprep.subr.mxu0 0.0
        %584 = vmatpush1.msra.mxu0 0.0
        %585 = vmatprep.subr.mxu0 0.0
        %586 = vmatpush1.msra.mxu0 0.0
        %587 = vmatprep.subr.mxu0 0.0
        %588 = vmatpush1.msra.mxu0 0.0
        %589 = vmatprep.subr.mxu0 0.0
        %590 = vmatpush1.msra.mxu0 0.0
        %591 = vmatprep.subr.mxu0 0.0
        %592 = vmatpush1.msra.mxu0 0.0
        %593 = vmatprep.subr.mxu0 0.0
        %594 = vmatpush1.msra.mxu0 0.0
        %595 = vmatprep.subr.mxu0 0.0
        %596 = vmatpush1.msra.mxu0 0.0
        %597 = vmatprep.mubr.f32.mxu0 0.0
        %598 = vmatmul.mubr.f32.gmra.mrb[0].mxu0 %v451
        %v599 = vpop.f32.mrb[0].mxu0
        %v600 = vadd.f32 %v427, %v599
        %v601 = vpop.f32.mrb[0].mxu0
        %602 = vmatprep.mubr.f32.mxu0 0.0
        %603 = vmatmul.mubr.f32.gmra.mrb[0].mxu0 %v454
        %v604 = vpop.f32.mrb[0].mxu0
        %v605 = vadd.f32 %v432, %v604
        %v606 = vpop.f32.mrb[0].mxu0
        %607 = vdwg.mxu0
        %s608 = scalar_lea.vmem %s1, 32
        %v609 = vld [vmem:[%s608] sm:$0xff]
        %v610 = vld [vmem:[%s608 + $0x8] sm:$0xff]
        %611 = vrot.lane.b32.xlu0 %v250, 92
        %v612 = vpop.permute.xlu0 %611
        %613 = vrot.lane.b32.xlu0 %v251, 92
        %v614 = vpop.permute.xlu0 %613
        %615 = vrot.lane.b32.xlu0 %v252, 92
        %v616 = vpop.permute.xlu0 %615
        %617 = vrot.lane.b32.xlu0 %v253, 92
        %v618 = vpop.permute.xlu0 %617
        %vm619 = vcmask 752640
        %v620 = vsel %vm619, %v612, %v614
        %v621 = vsel %vm619, %v614, %v616
        %v622 = vsel %vm619, %v616, %v618
        %v627 = vsel %vm276, %v609, 0
        %v630 = vsel %vm276, %v610, 0
        %632 = vmatprep.subr.mxu0 %v621
        %633 = vmatpush1.msra.mxu0 %v620
        %634 = vmatprep.subr.mxu0 0.0
        %635 = vmatpush1.msra.mxu0 0.0
        %636 = vmatprep.subr.mxu0 0.0
        %637 = vmatpush1.msra.mxu0 0.0
        %638 = vmatprep.subr.mxu0 0.0
        %639 = vmatpush1.msra.mxu0 0.0
        %640 = vmatprep.subr.mxu0 0.0
        %641 = vmatpush1.msra.mxu0 0.0
        %642 = vmatprep.subr.mxu0 0.0
        %643 = vmatpush1.msra.mxu0 0.0
        %644 = vmatprep.subr.mxu0 0.0
        %645 = vmatpush1.msra.mxu0 0.0
        %646 = vmatprep.subr.mxu0 0.0
        %647 = vmatpush1.msra.mxu0 0.0
        %648 = vmatprep.subr.mxu0 0.0
        %649 = vmatpush1.msra.mxu0 0.0
        %650 = vmatprep.subr.mxu0 0.0
        %651 = vmatpush1.msra.mxu0 0.0
        %652 = vmatprep.subr.mxu0 0.0
        %653 = vmatpush1.msra.mxu0 0.0
        %654 = vmatprep.subr.mxu0 0.0
        %655 = vmatpush1.msra.mxu0 0.0
        %656 = vmatprep.subr.mxu0 0.0
        %657 = vmatpush1.msra.mxu0 0.0
        %658 = vmatprep.subr.mxu0 0.0
        %659 = vmatpush1.msra.mxu0 0.0
        %660 = vmatprep.subr.mxu0 0.0
        %661 = vmatpush1.msra.mxu0 0.0
        %662 = vmatprep.subr.mxu0 0.0
        %663 = vmatpush1.msra.mxu0 0.0
        %664 = vmatprep.subr.mxu0 0.0
        %665 = vmatpush1.msra.mxu0 0.0
        %666 = vmatprep.subr.mxu0 0.0
        %667 = vmatpush1.msra.mxu0 0.0
        %668 = vmatprep.subr.mxu0 0.0
        %669 = vmatpush1.msra.mxu0 0.0
        %670 = vmatprep.subr.mxu0 0.0
        %671 = vmatpush1.msra.mxu0 0.0
        %672 = vmatprep.subr.mxu0 0.0
        %673 = vmatpush1.msra.mxu0 0.0
        %674 = vmatprep.subr.mxu0 0.0
        %675 = vmatpush1.msra.mxu0 0.0
        %676 = vmatprep.subr.mxu0 0.0
        %677 = vmatpush1.msra.mxu0 0.0
        %678 = vmatprep.subr.mxu0 0.0
        %679 = vmatpush1.msra.mxu0 0.0
        %680 = vmatprep.subr.mxu0 0.0
        %681 = vmatpush1.msra.mxu0 0.0
        %682 = vmatprep.subr.mxu0 0.0
        %683 = vmatpush1.msra.mxu0 0.0
        %684 = vmatprep.subr.mxu0 0.0
        %685 = vmatpush1.msra.mxu0 0.0
        %686 = vmatprep.subr.mxu0 0.0
        %687 = vmatpush1.msra.mxu0 0.0
        %688 = vmatprep.subr.mxu0 0.0
        %689 = vmatpush1.msra.mxu0 0.0
        %690 = vmatprep.subr.mxu0 0.0
        %691 = vmatpush1.msra.mxu0 0.0
        %692 = vmatprep.subr.mxu0 0.0
        %693 = vmatpush1.msra.mxu0 0.0
        %694 = vmatprep.subr.mxu0 0.0
        %695 = vmatpush1.msra.mxu0 0.0
        %696 = vmatprep.mubr.f32.mxu0 0.0
        %697 = vmatmul.mubr.f32.gmra.mrb[0].mxu0 %v627
        %v698 = vpop.f32.mrb[0].mxu0
        %v699 = vadd.f32 0.0, %v698
        %v700 = vpop.f32.mrb[0].mxu0
        %v701 = vadd.f32 0.0, %v700
        %702 = vmatprep.mubr.f32.mxu0 0.0
        %703 = vmatmul.mubr.f32.gmra.mrb[0].mxu0 %v630
        %v704 = vpop.f32.mrb[0].mxu0
        %v705 = vadd.f32 0.0, %v704
        %v706 = vpop.f32.mrb[0].mxu0
        %v707 = vadd.f32 0.0, %v706
        %708 = vdwg.mxu0
        %709 = vmatprep.subr.mxu0 0.0
        %710 = vmatpush1.msra.mxu0 %v622
        %711 = vmatprep.subr.mxu0 0.0
        %712 = vmatpush1.msra.mxu0 0.0
        %713 = vmatprep.subr.mxu0 0.0
        %714 = vmatpush1.msra.mxu0 0.0
        %715 = vmatprep.subr.mxu0 0.0
        %716 = vmatpush1.msra.mxu0 0.0
        %717 = vmatprep.subr.mxu0 0.0
        %718 = vmatpush1.msra.mxu0 0.0
        %719 = vmatprep.subr.mxu0 0.0
        %720 = vmatpush1.msra.mxu0 0.0
        %721 = vmatprep.subr.mxu0 0.0
        %722 = vmatpush1.msra.mxu0 0.0
        %723 = vmatprep.subr.mxu0 0.0
        %724 = vmatpush1.msra.mxu0 0.0
        %725 = vmatprep.subr.mxu0 0.0
        %726 = vmatpush1.msra.mxu0 0.0
        %727 = vmatprep.subr.mxu0 0.0
        %728 = vmatpush1.msra.mxu0 0.0
        %729 = vmatprep.subr.mxu0 0.0
        %730 = vmatpush1.msra.mxu0 0.0
        %731 = vmatprep.subr.mxu0 0.0
        %732 = vmatpush1.msra.mxu0 0.0
        %733 = vmatprep.subr.mxu0 0.0
        %734 = vmatpush1.msra.mxu0 0.0
        %735 = vmatprep.subr.mxu0 0.0
        %736 = vmatpush1.msra.mxu0 0.0
        %737 = vmatprep.subr.mxu0 0.0
        %738 = vmatpush1.msra.mxu0 0.0
        %739 = vmatprep.subr.mxu0 0.0
        %740 = vmatpush1.msra.mxu0 0.0
        %741 = vmatprep.subr.mxu0 0.0
        %742 = vmatpush1.msra.mxu0 0.0
        %743 = vmatprep.subr.mxu0 0.0
        %744 = vmatpush1.msra.mxu0 0.0
        %745 = vmatprep.subr.mxu0 0.0
        %746 = vmatpush1.msra.mxu0 0.0
        %747 = vmatprep.subr.mxu0 0.0
        %748 = vmatpush1.msra.mxu0 0.0
        %749 = vmatprep.subr.mxu0 0.0
        %750 = vmatpush1.msra.mxu0 0.0
        %751 = vmatprep.subr.mxu0 0.0
        %752 = vmatpush1.msra.mxu0 0.0
        %753 = vmatprep.subr.mxu0 0.0
        %754 = vmatpush1.msra.mxu0 0.0
        %755 = vmatprep.subr.mxu0 0.0
        %756 = vmatpush1.msra.mxu0 0.0
        %757 = vmatprep.subr.mxu0 0.0
        %758 = vmatpush1.msra.mxu0 0.0
        %759 = vmatprep.subr.mxu0 0.0
        %760 = vmatpush1.msra.mxu0 0.0
        %761 = vmatprep.subr.mxu0 0.0
        %762 = vmatpush1.msra.mxu0 0.0
        %763 = vmatprep.subr.mxu0 0.0
        %764 = vmatpush1.msra.mxu0 0.0
        %765 = vmatprep.subr.mxu0 0.0
        %766 = vmatpush1.msra.mxu0 0.0
        %767 = vmatprep.subr.mxu0 0.0
        %768 = vmatpush1.msra.mxu0 0.0
        %769 = vmatprep.subr.mxu0 0.0
        %770 = vmatpush1.msra.mxu0 0.0
        %771 = vmatprep.subr.mxu0 0.0
        %772 = vmatpush1.msra.mxu0 0.0
        %773 = vmatprep.mubr.f32.mxu0 0.0
        %774 = vmatmul.mubr.f32.gmra.mrb[0].mxu0 %v627
        %v775 = vpop.f32.mrb[0].mxu0
        %v776 = vadd.f32 0.0, %v775
        %v777 = vpop.f32.mrb[0].mxu0
        %778 = vmatprep.mubr.f32.mxu0 0.0
        %779 = vmatmul.mubr.f32.gmra.mrb[0].mxu0 %v630
        %v780 = vpop.f32.mrb[0].mxu0
        %v781 = vadd.f32 0.0, %v780
        %v782 = vpop.f32.mrb[0].mxu0
        %783 = vdwg.mxu0
        %v784 = vadd.f32 %v523, %v699
        %v785 = vadd.f32 %v525, %v701
        %v786 = vadd.f32 %v600, %v776
        %v787 = vadd.f32 %v529, %v705
        %v788 = vadd.f32 %v531, %v707
        %v789 = vadd.f32 %v605, %v781
        %s790 = scalar_lea.vmem %s1, 48
        %v791 = vld [vmem:[%s790] sm:$0xff]
        %v792 = vld [vmem:[%s790 + $0x8] sm:$0xff]
        %793 = vrot.lane.b32.xlu0 %v250, 108
        %v794 = vpop.permute.xlu0 %793
        %795 = vrot.lane.b32.xlu0 %v251, 108
        %v796 = vpop.permute.xlu0 %795
        %797 = vrot.lane.b32.xlu0 %v252, 108
        %v798 = vpop.permute.xlu0 %797
        %799 = vrot.lane.b32.xlu0 %v253, 108
        %v800 = vpop.permute.xlu0 %799
        %vm801 = vcmask 883712
        %v802 = vsel %vm801, %v794, %v796
        %v803 = vsel %vm801, %v796, %v798
        %v804 = vsel %vm801, %v798, %v800
        %v809 = vsel %vm276, %v791, 0
        %v812 = vsel %vm276, %v792, 0
        %814 = vmatprep.subr.mxu0 %v803
        %815 = vmatpush1.msra.mxu0 %v802
        %816 = vmatprep.subr.mxu0 0.0
        %817 = vmatpush1.msra.mxu0 0.0
        %818 = vmatprep.subr.mxu0 0.0
        %819 = vmatpush1.msra.mxu0 0.0
        %820 = vmatprep.subr.mxu0 0.0
        %821 = vmatpush1.msra.mxu0 0.0
        %822 = vmatprep.subr.mxu0 0.0
        %823 = vmatpush1.msra.mxu0 0.0
        %824 = vmatprep.subr.mxu0 0.0
        %825 = vmatpush1.msra.mxu0 0.0
        %826 = vmatprep.subr.mxu0 0.0
        %827 = vmatpush1.msra.mxu0 0.0
        %828 = vmatprep.subr.mxu0 0.0
        %829 = vmatpush1.msra.mxu0 0.0
        %830 = vmatprep.subr.mxu0 0.0
        %831 = vmatpush1.msra.mxu0 0.0
        %832 = vmatprep.subr.mxu0 0.0
        %833 = vmatpush1.msra.mxu0 0.0
        %834 = vmatprep.subr.mxu0 0.0
        %835 = vmatpush1.msra.mxu0 0.0
        %836 = vmatprep.subr.mxu0 0.0
        %837 = vmatpush1.msra.mxu0 0.0
        %838 = vmatprep.subr.mxu0 0.0
        %839 = vmatpush1.msra.mxu0 0.0
        %840 = vmatprep.subr.mxu0 0.0
        %841 = vmatpush1.msra.mxu0 0.0
        %842 = vmatprep.subr.mxu0 0.0
        %843 = vmatpush1.msra.mxu0 0.0
        %844 = vmatprep.subr.mxu0 0.0
        %845 = vmatpush1.msra.mxu0 0.0
        %846 = vmatprep.subr.mxu0 0.0
        %847 = vmatpush1.msra.mxu0 0.0
        %848 = vmatprep.subr.mxu0 0.0
        %849 = vmatpush1.msra.mxu0 0.0
        %850 = vmatprep.subr.mxu0 0.0
        %851 = vmatpush1.msra.mxu0 0.0
        %852 = vmatprep.subr.mxu0 0.0
        %853 = vmatpush1.msra.mxu0 0.0
        %854 = vmatprep.subr.mxu0 0.0
        %855 = vmatpush1.msra.mxu0 0.0
        %856 = vmatprep.subr.mxu0 0.0
        %857 = vmatpush1.msra.mxu0 0.0
        %858 = vmatprep.subr.mxu0 0.0
        %859 = vmatpush1.msra.mxu0 0.0
        %860 = vmatprep.subr.mxu0 0.0
        %861 = vmatpush1.msra.mxu0 0.0
        %862 = vmatprep.subr.mxu0 0.0
        %863 = vmatpush1.msra.mxu0 0.0
        %864 = vmatprep.subr.mxu0 0.0
        %865 = vmatpush1.msra.mxu0 0.0
        %866 = vmatprep.subr.mxu0 0.0
        %867 = vmatpush1.msra.mxu0 0.0
        %868 = vmatprep.subr.mxu0 0.0
        %869 = vmatpush1.msra.mxu0 0.0
        %870 = vmatprep.subr.mxu0 0.0
        %871 = vmatpush1.msra.mxu0 0.0
        %872 = vmatprep.subr.mxu0 0.0
        %873 = vmatpush1.msra.mxu0 0.0
        %874 = vmatprep.subr.mxu0 0.0
        %875 = vmatpush1.msra.mxu0 0.0
        %876 = vmatprep.subr.mxu0 0.0
        %877 = vmatpush1.msra.mxu0 0.0
        %878 = vmatprep.mubr.f32.mxu0 0.0
        %879 = vmatmul.mubr.f32.gmra.mrb[0].mxu0 %v809
        %v880 = vpop.f32.mrb[0].mxu0
        %v881 = vadd.f32 0.0, %v880
        %v882 = vpop.f32.mrb[0].mxu0
        %v883 = vadd.f32 0.0, %v882
        %884 = vmatprep.mubr.f32.mxu0 0.0
        %885 = vmatmul.mubr.f32.gmra.mrb[0].mxu0 %v812
        %v886 = vpop.f32.mrb[0].mxu0
        %v887 = vadd.f32 0.0, %v886
        %v888 = vpop.f32.mrb[0].mxu0
        %v889 = vadd.f32 0.0, %v888
        %890 = vdwg.mxu0
        %891 = vmatprep.subr.mxu0 0.0
        %892 = vmatpush1.msra.mxu0 %v804
        %893 = vmatprep.subr.mxu0 0.0
        %894 = vmatpush1.msra.mxu0 0.0
        %895 = vmatprep.subr.mxu0 0.0
        %896 = vmatpush1.msra.mxu0 0.0
        %897 = vmatprep.subr.mxu0 0.0
        %898 = vmatpush1.msra.mxu0 0.0
        %899 = vmatprep.subr.mxu0 0.0
        %900 = vmatpush1.msra.mxu0 0.0
        %901 = vmatprep.subr.mxu0 0.0
        %902 = vmatpush1.msra.mxu0 0.0
        %903 = vmatprep.subr.mxu0 0.0
        %904 = vmatpush1.msra.mxu0 0.0
        %905 = vmatprep.subr.mxu0 0.0
        %906 = vmatpush1.msra.mxu0 0.0
        %907 = vmatprep.subr.mxu0 0.0
        %908 = vmatpush1.msra.mxu0 0.0
        %909 = vmatprep.subr.mxu0 0.0
        %910 = vmatpush1.msra.mxu0 0.0
        %911 = vmatprep.subr.mxu0 0.0
        %912 = vmatpush1.msra.mxu0 0.0
        %913 = vmatprep.subr.mxu0 0.0
        %914 = vmatpush1.msra.mxu0 0.0
        %915 = vmatprep.subr.mxu0 0.0
        %916 = vmatpush1.msra.mxu0 0.0
        %917 = vmatprep.subr.mxu0 0.0
        %918 = vmatpush1.msra.mxu0 0.0
        %919 = vmatprep.subr.mxu0 0.0
        %920 = vmatpush1.msra.mxu0 0.0
        %921 = vmatprep.subr.mxu0 0.0
        %922 = vmatpush1.msra.mxu0 0.0
        %923 = vmatprep.subr.mxu0 0.0
        %924 = vmatpush1.msra.mxu0 0.0
        %925 = vmatprep.subr.mxu0 0.0
        %926 = vmatpush1.msra.mxu0 0.0
        %927 = vmatprep.subr.mxu0 0.0
        %928 = vmatpush1.msra.mxu0 0.0
        %929 = vmatprep.subr.mxu0 0.0
        %930 = vmatpush1.msra.mxu0 0.0
        %931 = vmatprep.subr.mxu0 0.0
        %932 = vmatpush1.msra.mxu0 0.0
        %933 = vmatprep.subr.mxu0 0.0
        %934 = vmatpush1.msra.mxu0 0.0
        %935 = vmatprep.subr.mxu0 0.0
        %936 = vmatpush1.msra.mxu0 0.0
        %937 = vmatprep.subr.mxu0 0.0
        %938 = vmatpush1.msra.mxu0 0.0
        %939 = vmatprep.subr.mxu0 0.0
        %940 = vmatpush1.msra.mxu0 0.0
        %941 = vmatprep.subr.mxu0 0.0
        %942 = vmatpush1.msra.mxu0 0.0
        %943 = vmatprep.subr.mxu0 0.0
        %944 = vmatpush1.msra.mxu0 0.0
        %945 = vmatprep.subr.mxu0 0.0
        %946 = vmatpush1.msra.mxu0 0.0
        %947 = vmatprep.subr.mxu0 0.0
        %948 = vmatpush1.msra.mxu0 0.0
        %949 = vmatprep.subr.mxu0 0.0
        %950 = vmatpush1.msra.mxu0 0.0
        %951 = vmatprep.subr.mxu0 0.0
        %952 = vmatpush1.msra.mxu0 0.0
        %953 = vmatprep.subr.mxu0 0.0
        %954 = vmatpush1.msra.mxu0 0.0
        %955 = vmatprep.mubr.f32.mxu0 0.0
        %956 = vmatmul.mubr.f32.gmra.mrb[0].mxu0 %v809
        %v957 = vpop.f32.mrb[0].mxu0
        %v958 = vadd.f32 0.0, %v957
        %v959 = vpop.f32.mrb[0].mxu0
        %960 = vmatprep.mubr.f32.mxu0 0.0
        %961 = vmatmul.mubr.f32.gmra.mrb[0].mxu0 %v812
        %v962 = vpop.f32.mrb[0].mxu0
        %v963 = vadd.f32 0.0, %v962
        %v964 = vpop.f32.mrb[0].mxu0
        %965 = vdwg.mxu0
        %v966 = vadd.f32 %v784, %v881
        %v967 = vadd.f32 %v785, %v883
        %v968 = vadd.f32 %v786, %v958
        %v969 = vadd.f32 %v787, %v887
        %v970 = vadd.f32 %v788, %v889
        %v971 = vadd.f32 %v789, %v963
        %s972 = scalar_lea.vmem %s1, 64
        %v973 = vld [vmem:[%s972] sm:$0xff]
        %v974 = vld [vmem:[%s972 + $0x8] sm:$0xff]
        %975 = vrot.lane.b32.xlu0 %v250, 109
        %v976 = vpop.permute.xlu0 %975
        %977 = vrot.lane.b32.xlu0 %v251, 109
        %v978 = vpop.permute.xlu0 %977
        %979 = vrot.lane.b32.xlu0 %v252, 109
        %v980 = vpop.permute.xlu0 %979
        %981 = vrot.lane.b32.xlu0 %v253, 109
        %v982 = vpop.permute.xlu0 %981
        %vm983 = vcmask 891904
        %v984 = vsel %vm983, %v976, %v978
        %v985 = vsel %vm983, %v978, %v980
        %v986 = vsel %vm983, %v980, %v982
        %v991 = vsel %vm276, %v973, 0
        %v994 = vsel %vm276, %v974, 0
        %996 = vmatprep.subr.mxu0 %v985
        %997 = vmatpush1.msra.mxu0 %v984
        %998 = vmatprep.subr.mxu0 0.0
        %999 = vmatpush1.msra.mxu0 0.0
        %1000 = vmatprep.subr.mxu0 0.0
        %1001 = vmatpush1.msra.mxu0 0.0
        %1002 = vmatprep.subr.mxu0 0.0
        %1003 = vmatpush1.msra.mxu0 0.0
        %1004 = vmatprep.subr.mxu0 0.0
        %1005 = vmatpush1.msra.mxu0 0.0
        %1006 = vmatprep.subr.mxu0 0.0
        %1007 = vmatpush1.msra.mxu0 0.0
        %1008 = vmatprep.subr.mxu0 0.0
        %1009 = vmatpush1.msra.mxu0 0.0
        %1010 = vmatprep.subr.mxu0 0.0
        %1011 = vmatpush1.msra.mxu0 0.0
        %1012 = vmatprep.subr.mxu0 0.0
        %1013 = vmatpush1.msra.mxu0 0.0
        %1014 = vmatprep.subr.mxu0 0.0
        %1015 = vmatpush1.msra.mxu0 0.0
        %1016 = vmatprep.subr.mxu0 0.0
        %1017 = vmatpush1.msra.mxu0 0.0
        %1018 = vmatprep.subr.mxu0 0.0
        %1019 = vmatpush1.msra.mxu0 0.0
        %1020 = vmatprep.subr.mxu0 0.0
        %1021 = vmatpush1.msra.mxu0 0.0
        %1022 = vmatprep.subr.mxu0 0.0
        %1023 = vmatpush1.msra.mxu0 0.0
        %1024 = vmatprep.subr.mxu0 0.0
        %1025 = vmatpush1.msra.mxu0 0.0
        %1026 = vmatprep.subr.mxu0 0.0
        %1027 = vmatpush1.msra.mxu0 0.0
        %1028 = vmatprep.subr.mxu0 0.0
        %1029 = vmatpush1.msra.mxu0 0.0
        %1030 = vmatprep.subr.mxu0 0.0
        %1031 = vmatpush1.msra.mxu0 0.0
        %1032 = vmatprep.subr.mxu0 0.0
        %1033 = vmatpush1.msra.mxu0 0.0
        %1034 = vmatprep.subr.mxu0 0.0
        %1035 = vmatpush1.msra.mxu0 0.0
        %1036 = vmatprep.subr.mxu0 0.0
        %1037 = vmatpush1.msra.mxu0 0.0
        %1038 = vmatprep.subr.mxu0 0.0
        %1039 = vmatpush1.msra.mxu0 0.0
        %1040 = vmatprep.subr.mxu0 0.0
        %1041 = vmatpush1.msra.mxu0 0.0
        %1042 = vmatprep.subr.mxu0 0.0
        %1043 = vmatpush1.msra.mxu0 0.0
        %1044 = vmatprep.subr.mxu0 0.0
        %1045 = vmatpush1.msra.mxu0 0.0
        %1046 = vmatprep.subr.mxu0 0.0
        %1047 = vmatpush1.msra.mxu0 0.0
        %1048 = vmatprep.subr.mxu0 0.0
        %1049 = vmatpush1.msra.mxu0 0.0
        %1050 = vmatprep.subr.mxu0 0.0
        %1051 = vmatpush1.msra.mxu0 0.0
        %1052 = vmatprep.subr.mxu0 0.0
        %1053 = vmatpush1.msra.mxu0 0.0
        %1054 = vmatprep.subr.mxu0 0.0
        %1055 = vmatpush1.msra.mxu0 0.0
        %1056 = vmatprep.subr.mxu0 0.0
        %1057 = vmatpush1.msra.mxu0 0.0
        %1058 = vmatprep.subr.mxu0 0.0
        %1059 = vmatpush1.msra.mxu0 0.0
        %1060 = vmatprep.mubr.f32.mxu0 0.0
        %1061 = vmatmul.mubr.f32.gmra.mrb[0].mxu0 %v991
        %v1062 = vpop.f32.mrb[0].mxu0
        %v1063 = vadd.f32 0.0, %v1062
        %v1064 = vpop.f32.mrb[0].mxu0
        %v1065 = vadd.f32 0.0, %v1064
        %1066 = vmatprep.mubr.f32.mxu0 0.0
        %1067 = vmatmul.mubr.f32.gmra.mrb[0].mxu0 %v994
        %v1068 = vpop.f32.mrb[0].mxu0
        %v1069 = vadd.f32 0.0, %v1068
        %v1070 = vpop.f32.mrb[0].mxu0
        %v1071 = vadd.f32 0.0, %v1070
        %1072 = vdwg.mxu0
        %1073 = vmatprep.subr.mxu0 0.0
        %1074 = vmatpush1.msra.mxu0 %v986
        %1075 = vmatprep.subr.mxu0 0.0
        %1076 = vmatpush1.msra.mxu0 0.0
        %1077 = vmatprep.subr.mxu0 0.0
        %1078 = vmatpush1.msra.mxu0 0.0
        %1079 = vmatprep.subr.mxu0 0.0
        %1080 = vmatpush1.msra.mxu0 0.0
        %1081 = vmatprep.subr.mxu0 0.0
        %1082 = vmatpush1.msra.mxu0 0.0
        %1083 = vmatprep.subr.mxu0 0.0
        %1084 = vmatpush1.msra.mxu0 0.0
        %1085 = vmatprep.subr.mxu0 0.0
        %1086 = vmatpush1.msra.mxu0 0.0
        %1087 = vmatprep.subr.mxu0 0.0
        %1088 = vmatpush1.msra.mxu0 0.0
        %1089 = vmatprep.subr.mxu0 0.0
        %1090 = vmatpush1.msra.mxu0 0.0
        %1091 = vmatprep.subr.mxu0 0.0
        %1092 = vmatpush1.msra.mxu0 0.0
        %1093 = vmatprep.subr.mxu0 0.0
        %1094 = vmatpush1.msra.mxu0 0.0
        %1095 = vmatprep.subr.mxu0 0.0
        %1096 = vmatpush1.msra.mxu0 0.0
        %1097 = vmatprep.subr.mxu0 0.0
        %1098 = vmatpush1.msra.mxu0 0.0
        %1099 = vmatprep.subr.mxu0 0.0
        %1100 = vmatpush1.msra.mxu0 0.0
        %1101 = vmatprep.subr.mxu0 0.0
        %1102 = vmatpush1.msra.mxu0 0.0
        %1103 = vmatprep.subr.mxu0 0.0
        %1104 = vmatpush1.msra.mxu0 0.0
        %1105 = vmatprep.subr.mxu0 0.0
        %1106 = vmatpush1.msra.mxu0 0.0
        %1107 = vmatprep.subr.mxu0 0.0
        %1108 = vmatpush1.msra.mxu0 0.0
        %1109 = vmatprep.subr.mxu0 0.0
        %1110 = vmatpush1.msra.mxu0 0.0
        %1111 = vmatprep.subr.mxu0 0.0
        %1112 = vmatpush1.msra.mxu0 0.0
        %1113 = vmatprep.subr.mxu0 0.0
        %1114 = vmatpush1.msra.mxu0 0.0
        %1115 = vmatprep.subr.mxu0 0.0
        %1116 = vmatpush1.msra.mxu0 0.0
        %1117 = vmatprep.subr.mxu0 0.0
        %1118 = vmatpush1.msra.mxu0 0.0
        %1119 = vmatprep.subr.mxu0 0.0
        %1120 = vmatpush1.msra.mxu0 0.0
        %1121 = vmatprep.subr.mxu0 0.0
        %1122 = vmatpush1.msra.mxu0 0.0
        %1123 = vmatprep.subr.mxu0 0.0
        %1124 = vmatpush1.msra.mxu0 0.0
        %1125 = vmatprep.subr.mxu0 0.0
        %1126 = vmatpush1.msra.mxu0 0.0
        %1127 = vmatprep.subr.mxu0 0.0
        %1128 = vmatpush1.msra.mxu0 0.0
        %1129 = vmatprep.subr.mxu0 0.0
        %1130 = vmatpush1.msra.mxu0 0.0
        %1131 = vmatprep.subr.mxu0 0.0
        %1132 = vmatpush1.msra.mxu0 0.0
        %1133 = vmatprep.subr.mxu0 0.0
        %1134 = vmatpush1.msra.mxu0 0.0
        %1135 = vmatprep.subr.mxu0 0.0
        %1136 = vmatpush1.msra.mxu0 0.0
        %1137 = vmatprep.mubr.f32.mxu0 0.0
        %1138 = vmatmul.mubr.f32.gmra.mrb[0].mxu0 %v991
        %v1139 = vpop.f32.mrb[0].mxu0
        %v1140 = vadd.f32 0.0, %v1139
        %v1141 = vpop.f32.mrb[0].mxu0
        %1142 = vmatprep.mubr.f32.mxu0 0.0
        %1143 = vmatmul.mubr.f32.gmra.mrb[0].mxu0 %v994
        %v1144 = vpop.f32.mrb[0].mxu0
        %v1145 = vadd.f32 0.0, %v1144
        %v1146 = vpop.f32.mrb[0].mxu0
        %1147 = vdwg.mxu0
        %v1148 = vadd.f32 %v966, %v1063
        %v1149 = vadd.f32 %v967, %v1065
        %v1150 = vadd.f32 %v968, %v1140
        %v1151 = vadd.f32 %v969, %v1069
        %v1152 = vadd.f32 %v970, %v1071
        %v1153 = vadd.f32 %v971, %v1145
        %s1154 = scalar_lea.vmem %s1, 80
        %v1155 = vld [vmem:[%s1154] sm:$0xff]
        %v1156 = vld [vmem:[%s1154 + $0x8] sm:$0xff]
        %1157 = vrot.lane.b32.xlu0 %v250, 110
        %v1158 = vpop.permute.xlu0 %1157
        %1159 = vrot.lane.b32.xlu0 %v251, 110
        %v1160 = vpop.permute.xlu0 %1159
        %1161 = vrot.lane.b32.xlu0 %v252, 110
        %v1162 = vpop.permute.xlu0 %1161
        %1163 = vrot.lane.b32.xlu0 %v253, 110
        %v1164 = vpop.permute.xlu0 %1163
        %vm1165 = vcmask 900096
        %v1166 = vsel %vm1165, %v1158, %v1160
        %v1167 = vsel %vm1165, %v1160, %v1162
        %v1168 = vsel %vm1165, %v1162, %v1164
        %v1173 = vsel %vm276, %v1155, 0
        %v1176 = vsel %vm276, %v1156, 0
        %1178 = vmatprep.subr.mxu0 %v1167
        %1179 = vmatpush1.msra.mxu0 %v1166
        %1180 = vmatprep.subr.mxu0 0.0
        %1181 = vmatpush1.msra.mxu0 0.0
        %1182 = vmatprep.subr.mxu0 0.0
        %1183 = vmatpush1.msra.mxu0 0.0
        %1184 = vmatprep.subr.mxu0 0.0
        %1185 = vmatpush1.msra.mxu0 0.0
        %1186 = vmatprep.subr.mxu0 0.0
        %1187 = vmatpush1.msra.mxu0 0.0
        %1188 = vmatprep.subr.mxu0 0.0
        %1189 = vmatpush1.msra.mxu0 0.0
        %1190 = vmatprep.subr.mxu0 0.0
        %1191 = vmatpush1.msra.mxu0 0.0
        %1192 = vmatprep.subr.mxu0 0.0
        %1193 = vmatpush1.msra.mxu0 0.0
        %1194 = vmatprep.subr.mxu0 0.0
        %1195 = vmatpush1.msra.mxu0 0.0
        %1196 = vmatprep.subr.mxu0 0.0
        %1197 = vmatpush1.msra.mxu0 0.0
        %1198 = vmatprep.subr.mxu0 0.0
        %1199 = vmatpush1.msra.mxu0 0.0
        %1200 = vmatprep.subr.mxu0 0.0
        %1201 = vmatpush1.msra.mxu0 0.0
        %1202 = vmatprep.subr.mxu0 0.0
        %1203 = vmatpush1.msra.mxu0 0.0
        %1204 = vmatprep.subr.mxu0 0.0
        %1205 = vmatpush1.msra.mxu0 0.0
        %1206 = vmatprep.subr.mxu0 0.0
        %1207 = vmatpush1.msra.mxu0 0.0
        %1208 = vmatprep.subr.mxu0 0.0
        %1209 = vmatpush1.msra.mxu0 0.0
        %1210 = vmatprep.subr.mxu0 0.0
        %1211 = vmatpush1.msra.mxu0 0.0
        %1212 = vmatprep.subr.mxu0 0.0
        %1213 = vmatpush1.msra.mxu0 0.0
        %1214 = vmatprep.subr.mxu0 0.0
        %1215 = vmatpush1.msra.mxu0 0.0
        %1216 = vmatprep.subr.mxu0 0.0
        %1217 = vmatpush1.msra.mxu0 0.0
        %1218 = vmatprep.subr.mxu0 0.0
        %1219 = vmatpush1.msra.mxu0 0.0
        %1220 = vmatprep.subr.mxu0 0.0
        %1221 = vmatpush1.msra.mxu0 0.0
        %1222 = vmatprep.subr.mxu0 0.0
        %1223 = vmatpush1.msra.mxu0 0.0
        %1224 = vmatprep.subr.mxu0 0.0
        %1225 = vmatpush1.msra.mxu0 0.0
        %1226 = vmatprep.subr.mxu0 0.0
        %1227 = vmatpush1.msra.mxu0 0.0
        %1228 = vmatprep.subr.mxu0 0.0
        %1229 = vmatpush1.msra.mxu0 0.0
        %1230 = vmatprep.subr.mxu0 0.0
        %1231 = vmatpush1.msra.mxu0 0.0
        %1232 = vmatprep.subr.mxu0 0.0
        %1233 = vmatpush1.msra.mxu0 0.0
        %1234 = vmatprep.subr.mxu0 0.0
        %1235 = vmatpush1.msra.mxu0 0.0
        %1236 = vmatprep.subr.mxu0 0.0
        %1237 = vmatpush1.msra.mxu0 0.0
        %1238 = vmatprep.subr.mxu0 0.0
        %1239 = vmatpush1.msra.mxu0 0.0
        %1240 = vmatprep.subr.mxu0 0.0
        %1241 = vmatpush1.msra.mxu0 0.0
        %1242 = vmatprep.mubr.f32.mxu0 0.0
        %1243 = vmatmul.mubr.f32.gmra.mrb[0].mxu0 %v1173
        %v1244 = vpop.f32.mrb[0].mxu0
        %v1245 = vadd.f32 0.0, %v1244
        %v1246 = vpop.f32.mrb[0].mxu0
        %v1247 = vadd.f32 0.0, %v1246
        %1248 = vmatprep.mubr.f32.mxu0 0.0
        %1249 = vmatmul.mubr.f32.gmra.mrb[0].mxu0 %v1176
        %v1250 = vpop.f32.mrb[0].mxu0
        %v1251 = vadd.f32 0.0, %v1250
        %v1252 = vpop.f32.mrb[0].mxu0
        %v1253 = vadd.f32 0.0, %v1252
        %1254 = vdwg.mxu0
        %1255 = vmatprep.subr.mxu0 0.0
        %1256 = vmatpush1.msra.mxu0 %v1168
        %1257 = vmatprep.subr.mxu0 0.0
        %1258 = vmatpush1.msra.mxu0 0.0
        %1259 = vmatprep.subr.mxu0 0.0
        %1260 = vmatpush1.msra.mxu0 0.0
        %1261 = vmatprep.subr.mxu0 0.0
        %1262 = vmatpush1.msra.mxu0 0.0
        %1263 = vmatprep.subr.mxu0 0.0
        %1264 = vmatpush1.msra.mxu0 0.0
        %1265 = vmatprep.subr.mxu0 0.0
        %1266 = vmatpush1.msra.mxu0 0.0
        %1267 = vmatprep.subr.mxu0 0.0
        %1268 = vmatpush1.msra.mxu0 0.0
        %1269 = vmatprep.subr.mxu0 0.0
        %1270 = vmatpush1.msra.mxu0 0.0
        %1271 = vmatprep.subr.mxu0 0.0
        %1272 = vmatpush1.msra.mxu0 0.0
        %1273 = vmatprep.subr.mxu0 0.0
        %1274 = vmatpush1.msra.mxu0 0.0
        %1275 = vmatprep.subr.mxu0 0.0
        %1276 = vmatpush1.msra.mxu0 0.0
        %1277 = vmatprep.subr.mxu0 0.0
        %1278 = vmatpush1.msra.mxu0 0.0
        %1279 = vmatprep.subr.mxu0 0.0
        %1280 = vmatpush1.msra.mxu0 0.0
        %1281 = vmatprep.subr.mxu0 0.0
        %1282 = vmatpush1.msra.mxu0 0.0
        %1283 = vmatprep.subr.mxu0 0.0
        %1284 = vmatpush1.msra.mxu0 0.0
        %1285 = vmatprep.subr.mxu0 0.0
        %1286 = vmatpush1.msra.mxu0 0.0
        %1287 = vmatprep.subr.mxu0 0.0
        %1288 = vmatpush1.msra.mxu0 0.0
        %1289 = vmatprep.subr.mxu0 0.0
        %1290 = vmatpush1.msra.mxu0 0.0
        %1291 = vmatprep.subr.mxu0 0.0
        %1292 = vmatpush1.msra.mxu0 0.0
        %1293 = vmatprep.subr.mxu0 0.0
        %1294 = vmatpush1.msra.mxu0 0.0
        %1295 = vmatprep.subr.mxu0 0.0
        %1296 = vmatpush1.msra.mxu0 0.0
        %1297 = vmatprep.subr.mxu0 0.0
        %1298 = vmatpush1.msra.mxu0 0.0
        %1299 = vmatprep.subr.mxu0 0.0
        %1300 = vmatpush1.msra.mxu0 0.0
        %1301 = vmatprep.subr.mxu0 0.0
        %1302 = vmatpush1.msra.mxu0 0.0
        %1303 = vmatprep.subr.mxu0 0.0
        %1304 = vmatpush1.msra.mxu0 0.0
        %1305 = vmatprep.subr.mxu0 0.0
        %1306 = vmatpush1.msra.mxu0 0.0
        %1307 = vmatprep.subr.mxu0 0.0
        %1308 = vmatpush1.msra.mxu0 0.0
        %1309 = vmatprep.subr.mxu0 0.0
        %1310 = vmatpush1.msra.mxu0 0.0
        %1311 = vmatprep.subr.mxu0 0.0
        %1312 = vmatpush1.msra.mxu0 0.0
        %1313 = vmatprep.subr.mxu0 0.0
        %1314 = vmatpush1.msra.mxu0 0.0
        %1315 = vmatprep.subr.mxu0 0.0
        %1316 = vmatpush1.msra.mxu0 0.0
        %1317 = vmatprep.subr.mxu0 0.0
        %1318 = vmatpush1.msra.mxu0 0.0
        %1319 = vmatprep.mubr.f32.mxu0 0.0
        %1320 = vmatmul.mubr.f32.gmra.mrb[0].mxu0 %v1173
        %v1321 = vpop.f32.mrb[0].mxu0
        %v1322 = vadd.f32 0.0, %v1321
        %v1323 = vpop.f32.mrb[0].mxu0
        %1324 = vmatprep.mubr.f32.mxu0 0.0
        %1325 = vmatmul.mubr.f32.gmra.mrb[0].mxu0 %v1176
        %v1326 = vpop.f32.mrb[0].mxu0
        %v1327 = vadd.f32 0.0, %v1326
        %v1328 = vpop.f32.mrb[0].mxu0
        %1329 = vdwg.mxu0
        %v1330 = vadd.f32 %v1148, %v1245
        %v1331 = vadd.f32 %v1149, %v1247
        %v1332 = vadd.f32 %v1150, %v1322
        %v1333 = vadd.f32 %v1151, %v1251
        %v1334 = vadd.f32 %v1152, %v1253
        %v1335 = vadd.f32 %v1153, %v1327
        %s1336 = scalar_lea.vmem %s1, 96
        %v1337 = vld [vmem:[%s1336] sm:$0xff]
        %v1338 = vld [vmem:[%s1336 + $0x8] sm:$0xff]
        %1339 = vrot.lane.b32.xlu0 %v250, 126
        %v1340 = vpop.permute.xlu0 %1339
        %1341 = vrot.lane.b32.xlu0 %v251, 126
        %v1342 = vpop.permute.xlu0 %1341
        %1343 = vrot.lane.b32.xlu0 %v252, 126
        %v1344 = vpop.permute.xlu0 %1343
        %1345 = vrot.lane.b32.xlu0 %v253, 126
        %v1346 = vpop.permute.xlu0 %1345
        %vm1347 = vcmask 1031168
        %v1348 = vsel %vm1347, %v1340, %v1342
        %v1349 = vsel %vm1347, %v1342, %v1344
        %v1350 = vsel %vm1347, %v1344, %v1346
        %v1355 = vsel %vm276, %v1337, 0
        %v1358 = vsel %vm276, %v1338, 0
        %1360 = vmatprep.subr.mxu0 %v1349
        %1361 = vmatpush1.msra.mxu0 %v1348
        %1362 = vmatprep.subr.mxu0 0.0
        %1363 = vmatpush1.msra.mxu0 0.0
        %1364 = vmatprep.subr.mxu0 0.0
        %1365 = vmatpush1.msra.mxu0 0.0
        %1366 = vmatprep.subr.mxu0 0.0
        %1367 = vmatpush1.msra.mxu0 0.0
        %1368 = vmatprep.subr.mxu0 0.0
        %1369 = vmatpush1.msra.mxu0 0.0
        %1370 = vmatprep.subr.mxu0 0.0
        %1371 = vmatpush1.msra.mxu0 0.0
        %1372 = vmatprep.subr.mxu0 0.0
        %1373 = vmatpush1.msra.mxu0 0.0
        %1374 = vmatprep.subr.mxu0 0.0
        %1375 = vmatpush1.msra.mxu0 0.0
        %1376 = vmatprep.subr.mxu0 0.0
        %1377 = vmatpush1.msra.mxu0 0.0
        %1378 = vmatprep.subr.mxu0 0.0
        %1379 = vmatpush1.msra.mxu0 0.0
        %1380 = vmatprep.subr.mxu0 0.0
        %1381 = vmatpush1.msra.mxu0 0.0
        %1382 = vmatprep.subr.mxu0 0.0
        %1383 = vmatpush1.msra.mxu0 0.0
        %1384 = vmatprep.subr.mxu0 0.0
        %1385 = vmatpush1.msra.mxu0 0.0
        %1386 = vmatprep.subr.mxu0 0.0
        %1387 = vmatpush1.msra.mxu0 0.0
        %1388 = vmatprep.subr.mxu0 0.0
        %1389 = vmatpush1.msra.mxu0 0.0
        %1390 = vmatprep.subr.mxu0 0.0
        %1391 = vmatpush1.msra.mxu0 0.0
        %1392 = vmatprep.subr.mxu0 0.0
        %1393 = vmatpush1.msra.mxu0 0.0
        %1394 = vmatprep.subr.mxu0 0.0
        %1395 = vmatpush1.msra.mxu0 0.0
        %1396 = vmatprep.subr.mxu0 0.0
        %1397 = vmatpush1.msra.mxu0 0.0
        %1398 = vmatprep.subr.mxu0 0.0
        %1399 = vmatpush1.msra.mxu0 0.0
        %1400 = vmatprep.subr.mxu0 0.0
        %1401 = vmatpush1.msra.mxu0 0.0
        %1402 = vmatprep.subr.mxu0 0.0
        %1403 = vmatpush1.msra.mxu0 0.0
        %1404 = vmatprep.subr.mxu0 0.0
        %1405 = vmatpush1.msra.mxu0 0.0
        %1406 = vmatprep.subr.mxu0 0.0
        %1407 = vmatpush1.msra.mxu0 0.0
        %1408 = vmatprep.subr.mxu0 0.0
        %1409 = vmatpush1.msra.mxu0 0.0
        %1410 = vmatprep.subr.mxu0 0.0
        %1411 = vmatpush1.msra.mxu0 0.0
        %1412 = vmatprep.subr.mxu0 0.0
        %1413 = vmatpush1.msra.mxu0 0.0
        %1414 = vmatprep.subr.mxu0 0.0
        %1415 = vmatpush1.msra.mxu0 0.0
        %1416 = vmatprep.subr.mxu0 0.0
        %1417 = vmatpush1.msra.mxu0 0.0
        %1418 = vmatprep.subr.mxu0 0.0
        %1419 = vmatpush1.msra.mxu0 0.0
        %1420 = vmatprep.subr.mxu0 0.0
        %1421 = vmatpush1.msra.mxu0 0.0
        %1422 = vmatprep.subr.mxu0 0.0
        %1423 = vmatpush1.msra.mxu0 0.0
        %1424 = vmatprep.mubr.f32.mxu0 0.0
        %1425 = vmatmul.mubr.f32.gmra.mrb[0].mxu0 %v1355
        %v1426 = vpop.f32.mrb[0].mxu0
        %v1427 = vadd.f32 0.0, %v1426
        %v1428 = vpop.f32.mrb[0].mxu0
        %v1429 = vadd.f32 0.0, %v1428
        %1430 = vmatprep.mubr.f32.mxu0 0.0
        %1431 = vmatmul.mubr.f32.gmra.mrb[0].mxu0 %v1358
        %v1432 = vpop.f32.mrb[0].mxu0
        %v1433 = vadd.f32 0.0, %v1432
        %v1434 = vpop.f32.mrb[0].mxu0
        %v1435 = vadd.f32 0.0, %v1434
        %1436 = vdwg.mxu0
        %1437 = vmatprep.subr.mxu0 0.0
        %1438 = vmatpush1.msra.mxu0 %v1350
        %1439 = vmatprep.subr.mxu0 0.0
        %1440 = vmatpush1.msra.mxu0 0.0
        %1441 = vmatprep.subr.mxu0 0.0
        %1442 = vmatpush1.msra.mxu0 0.0
        %1443 = vmatprep.subr.mxu0 0.0
        %1444 = vmatpush1.msra.mxu0 0.0
        %1445 = vmatprep.subr.mxu0 0.0
        %1446 = vmatpush1.msra.mxu0 0.0
        %1447 = vmatprep.subr.mxu0 0.0
        %1448 = vmatpush1.msra.mxu0 0.0
        %1449 = vmatprep.subr.mxu0 0.0
        %1450 = vmatpush1.msra.mxu0 0.0
        %1451 = vmatprep.subr.mxu0 0.0
        %1452 = vmatpush1.msra.mxu0 0.0
        %1453 = vmatprep.subr.mxu0 0.0
        %1454 = vmatpush1.msra.mxu0 0.0
        %1455 = vmatprep.subr.mxu0 0.0
        %1456 = vmatpush1.msra.mxu0 0.0
        %1457 = vmatprep.subr.mxu0 0.0
        %1458 = vmatpush1.msra.mxu0 0.0
        %1459 = vmatprep.subr.mxu0 0.0
        %1460 = vmatpush1.msra.mxu0 0.0
        %1461 = vmatprep.subr.mxu0 0.0
        %1462 = vmatpush1.msra.mxu0 0.0
        %1463 = vmatprep.subr.mxu0 0.0
        %1464 = vmatpush1.msra.mxu0 0.0
        %1465 = vmatprep.subr.mxu0 0.0
        %1466 = vmatpush1.msra.mxu0 0.0
        %1467 = vmatprep.subr.mxu0 0.0
        %1468 = vmatpush1.msra.mxu0 0.0
        %1469 = vmatprep.subr.mxu0 0.0
        %1470 = vmatpush1.msra.mxu0 0.0
        %1471 = vmatprep.subr.mxu0 0.0
        %1472 = vmatpush1.msra.mxu0 0.0
        %1473 = vmatprep.subr.mxu0 0.0
        %1474 = vmatpush1.msra.mxu0 0.0
        %1475 = vmatprep.subr.mxu0 0.0
        %1476 = vmatpush1.msra.mxu0 0.0
        %1477 = vmatprep.subr.mxu0 0.0
        %1478 = vmatpush1.msra.mxu0 0.0
        %1479 = vmatprep.subr.mxu0 0.0
        %1480 = vmatpush1.msra.mxu0 0.0
        %1481 = vmatprep.subr.mxu0 0.0
        %1482 = vmatpush1.msra.mxu0 0.0
        %1483 = vmatprep.subr.mxu0 0.0
        %1484 = vmatpush1.msra.mxu0 0.0
        %1485 = vmatprep.subr.mxu0 0.0
        %1486 = vmatpush1.msra.mxu0 0.0
        %1487 = vmatprep.subr.mxu0 0.0
        %1488 = vmatpush1.msra.mxu0 0.0
        %1489 = vmatprep.subr.mxu0 0.0
        %1490 = vmatpush1.msra.mxu0 0.0
        %1491 = vmatprep.subr.mxu0 0.0
        %1492 = vmatpush1.msra.mxu0 0.0
        %1493 = vmatprep.subr.mxu0 0.0
        %1494 = vmatpush1.msra.mxu0 0.0
        %1495 = vmatprep.subr.mxu0 0.0
        %1496 = vmatpush1.msra.mxu0 0.0
        %1497 = vmatprep.subr.mxu0 0.0
        %1498 = vmatpush1.msra.mxu0 0.0
        %1499 = vmatprep.subr.mxu0 0.0
        %1500 = vmatpush1.msra.mxu0 0.0
        %1501 = vmatprep.mubr.f32.mxu0 0.0
        %1502 = vmatmul.mubr.f32.gmra.mrb[0].mxu0 %v1355
        %v1503 = vpop.f32.mrb[0].mxu0
        %v1504 = vadd.f32 0.0, %v1503
        %v1505 = vpop.f32.mrb[0].mxu0
        %1506 = vmatprep.mubr.f32.mxu0 0.0
        %1507 = vmatmul.mubr.f32.gmra.mrb[0].mxu0 %v1358
        %v1508 = vpop.f32.mrb[0].mxu0
        %v1509 = vadd.f32 0.0, %v1508
        %v1510 = vpop.f32.mrb[0].mxu0
        %1511 = vdwg.mxu0
        %v1512 = vadd.f32 %v1330, %v1427
        %v1513 = vadd.f32 %v1331, %v1429
        %v1514 = vadd.f32 %v1332, %v1504
        %v1515 = vadd.f32 %v1333, %v1433
        %v1516 = vadd.f32 %v1334, %v1435
        %v1517 = vadd.f32 %v1335, %v1509
        %s1518 = scalar_lea.vmem %s1, 112
        %v1519 = vld [vmem:[%s1518] sm:$0xff]
        %v1520 = vld [vmem:[%s1518 + $0x8] sm:$0xff]
        %1521 = vrot.lane.b32.xlu0 %v250, 127
        %v1522 = vpop.permute.xlu0 %1521
        %1523 = vrot.lane.b32.xlu0 %v251, 127
        %v1524 = vpop.permute.xlu0 %1523
        %1525 = vrot.lane.b32.xlu0 %v252, 127
        %v1526 = vpop.permute.xlu0 %1525
        %1527 = vrot.lane.b32.xlu0 %v253, 127
        %v1528 = vpop.permute.xlu0 %1527
        %vm1529 = vcmask 1039360
        %v1530 = vsel %vm1529, %v1522, %v1524
        %v1531 = vsel %vm1529, %v1524, %v1526
        %v1532 = vsel %vm1529, %v1526, %v1528
        %v1537 = vsel %vm276, %v1519, 0
        %v1540 = vsel %vm276, %v1520, 0
        %1542 = vmatprep.subr.mxu0 %v1531
        %1543 = vmatpush1.msra.mxu0 %v1530
        %1544 = vmatprep.subr.mxu0 0.0
        %1545 = vmatpush1.msra.mxu0 0.0
        %1546 = vmatprep.subr.mxu0 0.0
        %1547 = vmatpush1.msra.mxu0 0.0
        %1548 = vmatprep.subr.mxu0 0.0
        %1549 = vmatpush1.msra.mxu0 0.0
        %1550 = vmatprep.subr.mxu0 0.0
        %1551 = vmatpush1.msra.mxu0 0.0
        %1552 = vmatprep.subr.mxu0 0.0
        %1553 = vmatpush1.msra.mxu0 0.0
        %1554 = vmatprep.subr.mxu0 0.0
        %1555 = vmatpush1.msra.mxu0 0.0
        %1556 = vmatprep.subr.mxu0 0.0
        %1557 = vmatpush1.msra.mxu0 0.0
        %1558 = vmatprep.subr.mxu0 0.0
        %1559 = vmatpush1.msra.mxu0 0.0
        %1560 = vmatprep.subr.mxu0 0.0
        %1561 = vmatpush1.msra.mxu0 0.0
        %1562 = vmatprep.subr.mxu0 0.0
        %1563 = vmatpush1.msra.mxu0 0.0
        %1564 = vmatprep.subr.mxu0 0.0
        %1565 = vmatpush1.msra.mxu0 0.0
        %1566 = vmatprep.subr.mxu0 0.0
        %1567 = vmatpush1.msra.mxu0 0.0
        %1568 = vmatprep.subr.mxu0 0.0
        %1569 = vmatpush1.msra.mxu0 0.0
        %1570 = vmatprep.subr.mxu0 0.0
        %1571 = vmatpush1.msra.mxu0 0.0
        %1572 = vmatprep.subr.mxu0 0.0
        %1573 = vmatpush1.msra.mxu0 0.0
        %1574 = vmatprep.subr.mxu0 0.0
        %1575 = vmatpush1.msra.mxu0 0.0
        %1576 = vmatprep.subr.mxu0 0.0
        %1577 = vmatpush1.msra.mxu0 0.0
        %1578 = vmatprep.subr.mxu0 0.0
        %1579 = vmatpush1.msra.mxu0 0.0
        %1580 = vmatprep.subr.mxu0 0.0
        %1581 = vmatpush1.msra.mxu0 0.0
        %1582 = vmatprep.subr.mxu0 0.0
        %1583 = vmatpush1.msra.mxu0 0.0
        %1584 = vmatprep.subr.mxu0 0.0
        %1585 = vmatpush1.msra.mxu0 0.0
        %1586 = vmatprep.subr.mxu0 0.0
        %1587 = vmatpush1.msra.mxu0 0.0
        %1588 = vmatprep.subr.mxu0 0.0
        %1589 = vmatpush1.msra.mxu0 0.0
        %1590 = vmatprep.subr.mxu0 0.0
        %1591 = vmatpush1.msra.mxu0 0.0
        %1592 = vmatprep.subr.mxu0 0.0
        %1593 = vmatpush1.msra.mxu0 0.0
        %1594 = vmatprep.subr.mxu0 0.0
        %1595 = vmatpush1.msra.mxu0 0.0
        %1596 = vmatprep.subr.mxu0 0.0
        %1597 = vmatpush1.msra.mxu0 0.0
        %1598 = vmatprep.subr.mxu0 0.0
        %1599 = vmatpush1.msra.mxu0 0.0
        %1600 = vmatprep.subr.mxu0 0.0
        %1601 = vmatpush1.msra.mxu0 0.0
        %1602 = vmatprep.subr.mxu0 0.0
        %1603 = vmatpush1.msra.mxu0 0.0
        %1604 = vmatprep.subr.mxu0 0.0
        %1605 = vmatpush1.msra.mxu0 0.0
        %1606 = vmatprep.mubr.f32.mxu0 0.0
        %1607 = vmatmul.mubr.f32.gmra.mrb[0].mxu0 %v1537
        %v1608 = vpop.f32.mrb[0].mxu0
        %v1609 = vadd.f32 0.0, %v1608
        %v1610 = vpop.f32.mrb[0].mxu0
        %v1611 = vadd.f32 0.0, %v1610
        %1612 = vmatprep.mubr.f32.mxu0 0.0
        %1613 = vmatmul.mubr.f32.gmra.mrb[0].mxu0 %v1540
        %v1614 = vpop.f32.mrb[0].mxu0
        %v1615 = vadd.f32 0.0, %v1614
        %v1616 = vpop.f32.mrb[0].mxu0
        %v1617 = vadd.f32 0.0, %v1616
        %1618 = vdwg.mxu0
        %1619 = vmatprep.subr.mxu0 0.0
        %1620 = vmatpush1.msra.mxu0 %v1532
        %1621 = vmatprep.subr.mxu0 0.0
        %1622 = vmatpush1.msra.mxu0 0.0
        %1623 = vmatprep.subr.mxu0 0.0
        %1624 = vmatpush1.msra.mxu0 0.0
        %1625 = vmatprep.subr.mxu0 0.0
        %1626 = vmatpush1.msra.mxu0 0.0
        %1627 = vmatprep.subr.mxu0 0.0
        %1628 = vmatpush1.msra.mxu0 0.0
        %1629 = vmatprep.subr.mxu0 0.0
        %1630 = vmatpush1.msra.mxu0 0.0
        %1631 = vmatprep.subr.mxu0 0.0
        %1632 = vmatpush1.msra.mxu0 0.0
        %1633 = vmatprep.subr.mxu0 0.0
        %1634 = vmatpush1.msra.mxu0 0.0
        %1635 = vmatprep.subr.mxu0 0.0
        %1636 = vmatpush1.msra.mxu0 0.0
        %1637 = vmatprep.subr.mxu0 0.0
        %1638 = vmatpush1.msra.mxu0 0.0
        %1639 = vmatprep.subr.mxu0 0.0
        %1640 = vmatpush1.msra.mxu0 0.0
        %1641 = vmatprep.subr.mxu0 0.0
        %1642 = vmatpush1.msra.mxu0 0.0
        %1643 = vmatprep.subr.mxu0 0.0
        %1644 = vmatpush1.msra.mxu0 0.0
        %1645 = vmatprep.subr.mxu0 0.0
        %1646 = vmatpush1.msra.mxu0 0.0
        %1647 = vmatprep.subr.mxu0 0.0
        %1648 = vmatpush1.msra.mxu0 0.0
        %1649 = vmatprep.subr.mxu0 0.0
        %1650 = vmatpush1.msra.mxu0 0.0
        %1651 = vmatprep.subr.mxu0 0.0
        %1652 = vmatpush1.msra.mxu0 0.0
        %1653 = vmatprep.subr.mxu0 0.0
        %1654 = vmatpush1.msra.mxu0 0.0
        %1655 = vmatprep.subr.mxu0 0.0
        %1656 = vmatpush1.msra.mxu0 0.0
        %1657 = vmatprep.subr.mxu0 0.0
        %1658 = vmatpush1.msra.mxu0 0.0
        %1659 = vmatprep.subr.mxu0 0.0
        %1660 = vmatpush1.msra.mxu0 0.0
        %1661 = vmatprep.subr.mxu0 0.0
        %1662 = vmatpush1.msra.mxu0 0.0
        %1663 = vmatprep.subr.mxu0 0.0
        %1664 = vmatpush1.msra.mxu0 0.0
        %1665 = vmatprep.subr.mxu0 0.0
        %1666 = vmatpush1.msra.mxu0 0.0
        %1667 = vmatprep.subr.mxu0 0.0
        %1668 = vmatpush1.msra.mxu0 0.0
        %1669 = vmatprep.subr.mxu0 0.0
        %1670 = vmatpush1.msra.mxu0 0.0
        %1671 = vmatprep.subr.mxu0 0.0
        %1672 = vmatpush1.msra.mxu0 0.0
        %1673 = vmatprep.subr.mxu0 0.0
        %1674 = vmatpush1.msra.mxu0 0.0
        %1675 = vmatprep.subr.mxu0 0.0
        %1676 = vmatpush1.msra.mxu0 0.0
        %1677 = vmatprep.subr.mxu0 0.0
        %1678 = vmatpush1.msra.mxu0 0.0
        %1679 = vmatprep.subr.mxu0 0.0
        %1680 = vmatpush1.msra.mxu0 0.0
        %1681 = vmatprep.subr.mxu0 0.0
        %1682 = vmatpush1.msra.mxu0 0.0
        %1683 = vmatprep.mubr.f32.mxu0 0.0
        %1684 = vmatmul.mubr.f32.gmra.mrb[0].mxu0 %v1537
        %v1685 = vpop.f32.mrb[0].mxu0
        %v1686 = vadd.f32 0.0, %v1685
        %v1687 = vpop.f32.mrb[0].mxu0
        %1688 = vmatprep.mubr.f32.mxu0 0.0
        %1689 = vmatmul.mubr.f32.gmra.mrb[0].mxu0 %v1540
        %v1690 = vpop.f32.mrb[0].mxu0
        %v1691 = vadd.f32 0.0, %v1690
        %v1692 = vpop.f32.mrb[0].mxu0
        %1693 = vdwg.mxu0
        %v1694 = vadd.f32 %v1512, %v1609
        %v1695 = vadd.f32 %v1513, %v1611
        %v1696 = vadd.f32 %v1514, %v1686
        %v1697 = vadd.f32 %v1515, %v1615
        %v1698 = vadd.f32 %v1516, %v1617
        %v1699 = vadd.f32 %v1517, %v1691
        %s1700 = scalar_lea.vmem %s1, 128
        %v1701 = vld [vmem:[%s1700] sm:$0xff]
        %v1702 = vld [vmem:[%s1700 + $0x8] sm:$0xff]
        %v1703 = vld [vmem:[%s237] sm:$0xff]
        %v1704 = vld [vmem:[%s237 + $0x8] sm:$0xff]
        %v1705 = vld [vmem:[%s237 + $0x10] sm:$0xff]
        %v1707 = vsel %vm276, %v1701, 0
        %v1710 = vsel %vm276, %v1702, 0
        %1712 = vmatprep.subr.mxu0 %v1704
        %1713 = vmatpush1.msra.mxu0 %v1703
        %1714 = vmatprep.subr.mxu0 0.0
        %1715 = vmatpush1.msra.mxu0 0.0
        %1716 = vmatprep.subr.mxu0 0.0
        %1717 = vmatpush1.msra.mxu0 0.0
        %1718 = vmatprep.subr.mxu0 0.0
        %1719 = vmatpush1.msra.mxu0 0.0
        %1720 = vmatprep.subr.mxu0 0.0
        %1721 = vmatpush1.msra.mxu0 0.0
        %1722 = vmatprep.subr.mxu0 0.0
        %1723 = vmatpush1.msra.mxu0 0.0
        %1724 = vmatprep.subr.mxu0 0.0
        %1725 = vmatpush1.msra.mxu0 0.0
        %1726 = vmatprep.subr.mxu0 0.0
        %1727 = vmatpush1.msra.mxu0 0.0
        %1728 = vmatprep.subr.mxu0 0.0
        %1729 = vmatpush1.msra.mxu0 0.0
        %1730 = vmatprep.subr.mxu0 0.0
        %1731 = vmatpush1.msra.mxu0 0.0
        %1732 = vmatprep.subr.mxu0 0.0
        %1733 = vmatpush1.msra.mxu0 0.0
        %1734 = vmatprep.subr.mxu0 0.0
        %1735 = vmatpush1.msra.mxu0 0.0
        %1736 = vmatprep.subr.mxu0 0.0
        %1737 = vmatpush1.msra.mxu0 0.0
        %1738 = vmatprep.subr.mxu0 0.0
        %1739 = vmatpush1.msra.mxu0 0.0
        %1740 = vmatprep.subr.mxu0 0.0
        %1741 = vmatpush1.msra.mxu0 0.0
        %1742 = vmatprep.subr.mxu0 0.0
        %1743 = vmatpush1.msra.mxu0 0.0
        %1744 = vmatprep.subr.mxu0 0.0
        %1745 = vmatpush1.msra.mxu0 0.0
        %1746 = vmatprep.subr.mxu0 0.0
        %1747 = vmatpush1.msra.mxu0 0.0
        %1748 = vmatprep.subr.mxu0 0.0
        %1749 = vmatpush1.msra.mxu0 0.0
        %1750 = vmatprep.subr.mxu0 0.0
        %1751 = vmatpush1.msra.mxu0 0.0
        %1752 = vmatprep.subr.mxu0 0.0
        %1753 = vmatpush1.msra.mxu0 0.0
        %1754 = vmatprep.subr.mxu0 0.0
        %1755 = vmatpush1.msra.mxu0 0.0
        %1756 = vmatprep.subr.mxu0 0.0
        %1757 = vmatpush1.msra.mxu0 0.0
        %1758 = vmatprep.subr.mxu0 0.0
        %1759 = vmatpush1.msra.mxu0 0.0
        %1760 = vmatprep.subr.mxu0 0.0
        %1761 = vmatpush1.msra.mxu0 0.0
        %1762 = vmatprep.subr.mxu0 0.0
        %1763 = vmatpush1.msra.mxu0 0.0
        %1764 = vmatprep.subr.mxu0 0.0
        %1765 = vmatpush1.msra.mxu0 0.0
        %1766 = vmatprep.subr.mxu0 0.0
        %1767 = vmatpush1.msra.mxu0 0.0
        %1768 = vmatprep.subr.mxu0 0.0
        %1769 = vmatpush1.msra.mxu0 0.0
        %1770 = vmatprep.subr.mxu0 0.0
        %1771 = vmatpush1.msra.mxu0 0.0
        %1772 = vmatprep.subr.mxu0 0.0
        %1773 = vmatpush1.msra.mxu0 0.0
        %1774 = vmatprep.subr.mxu0 0.0
        %1775 = vmatpush1.msra.mxu0 0.0
        %1776 = vmatprep.mubr.f32.mxu0 0.0
        %1777 = vmatmul.mubr.f32.gmra.mrb[0].mxu0 %v1707
        %v1778 = vpop.f32.mrb[0].mxu0
        %v1779 = vadd.f32 0.0, %v1778
        %v1780 = vpop.f32.mrb[0].mxu0
        %v1781 = vadd.f32 0.0, %v1780
        %1782 = vmatprep.mubr.f32.mxu0 0.0
        %1783 = vmatmul.mubr.f32.gmra.mrb[0].mxu0 %v1710
        %v1784 = vpop.f32.mrb[0].mxu0
        %v1785 = vadd.f32 0.0, %v1784
        %v1786 = vpop.f32.mrb[0].mxu0
        %v1787 = vadd.f32 0.0, %v1786
        %1788 = vdwg.mxu0
        %1789 = vmatprep.subr.mxu0 0.0
        %1790 = vmatpush1.msra.mxu0 %v1705
        %1791 = vmatprep.subr.mxu0 0.0
        %1792 = vmatpush1.msra.mxu0 0.0
        %1793 = vmatprep.subr.mxu0 0.0
        %1794 = vmatpush1.msra.mxu0 0.0
        %1795 = vmatprep.subr.mxu0 0.0
        %1796 = vmatpush1.msra.mxu0 0.0
        %1797 = vmatprep.subr.mxu0 0.0
        %1798 = vmatpush1.msra.mxu0 0.0
        %1799 = vmatprep.subr.mxu0 0.0
        %1800 = vmatpush1.msra.mxu0 0.0
        %1801 = vmatprep.subr.mxu0 0.0
        %1802 = vmatpush1.msra.mxu0 0.0
        %1803 = vmatprep.subr.mxu0 0.0
        %1804 = vmatpush1.msra.mxu0 0.0
        %1805 = vmatprep.subr.mxu0 0.0
        %1806 = vmatpush1.msra.mxu0 0.0
        %1807 = vmatprep.subr.mxu0 0.0
        %1808 = vmatpush1.msra.mxu0 0.0
        %1809 = vmatprep.subr.mxu0 0.0
        %1810 = vmatpush1.msra.mxu0 0.0
        %1811 = vmatprep.subr.mxu0 0.0
        %1812 = vmatpush1.msra.mxu0 0.0
        %1813 = vmatprep.subr.mxu0 0.0
        %1814 = vmatpush1.msra.mxu0 0.0
        %1815 = vmatprep.subr.mxu0 0.0
        %1816 = vmatpush1.msra.mxu0 0.0
        %1817 = vmatprep.subr.mxu0 0.0
        %1818 = vmatpush1.msra.mxu0 0.0
        %1819 = vmatprep.subr.mxu0 0.0
        %1820 = vmatpush1.msra.mxu0 0.0
        %1821 = vmatprep.subr.mxu0 0.0
        %1822 = vmatpush1.msra.mxu0 0.0
        %1823 = vmatprep.subr.mxu0 0.0
        %1824 = vmatpush1.msra.mxu0 0.0
        %1825 = vmatprep.subr.mxu0 0.0
        %1826 = vmatpush1.msra.mxu0 0.0
        %1827 = vmatprep.subr.mxu0 0.0
        %1828 = vmatpush1.msra.mxu0 0.0
        %1829 = vmatprep.subr.mxu0 0.0
        %1830 = vmatpush1.msra.mxu0 0.0
        %1831 = vmatprep.subr.mxu0 0.0
        %1832 = vmatpush1.msra.mxu0 0.0
        %1833 = vmatprep.subr.mxu0 0.0
        %1834 = vmatpush1.msra.mxu0 0.0
        %1835 = vmatprep.subr.mxu0 0.0
        %1836 = vmatpush1.msra.mxu0 0.0
        %1837 = vmatprep.subr.mxu0 0.0
        %1838 = vmatpush1.msra.mxu0 0.0
        %1839 = vmatprep.subr.mxu0 0.0
        %1840 = vmatpush1.msra.mxu0 0.0
        %1841 = vmatprep.subr.mxu0 0.0
        %1842 = vmatpush1.msra.mxu0 0.0
        %1843 = vmatprep.subr.mxu0 0.0
        %1844 = vmatpush1.msra.mxu0 0.0
        %1845 = vmatprep.subr.mxu0 0.0
        %1846 = vmatpush1.msra.mxu0 0.0
        %1847 = vmatprep.subr.mxu0 0.0
        %1848 = vmatpush1.msra.mxu0 0.0
        %1849 = vmatprep.subr.mxu0 0.0
        %1850 = vmatpush1.msra.mxu0 0.0
        %1851 = vmatprep.subr.mxu0 0.0
        %1852 = vmatpush1.msra.mxu0 0.0
        %1853 = vmatprep.mubr.f32.mxu0 0.0
        %1854 = vmatmul.mubr.f32.gmra.mrb[0].mxu0 %v1707
        %v1855 = vpop.f32.mrb[0].mxu0
        %v1856 = vadd.f32 0.0, %v1855
        %v1857 = vpop.f32.mrb[0].mxu0
        %1858 = vmatprep.mubr.f32.mxu0 0.0
        %1859 = vmatmul.mubr.f32.gmra.mrb[0].mxu0 %v1710
        %v1860 = vpop.f32.mrb[0].mxu0
        %v1861 = vadd.f32 0.0, %v1860
        %v1862 = vpop.f32.mrb[0].mxu0
        %1863 = vdwg.mxu0
        %v1864 = vadd.f32 %v1694, %v1779
        %v1865 = vadd.f32 %v1695, %v1781
        %v1866 = vadd.f32 %v1696, %v1856
        %v1867 = vadd.f32 %v1697, %v1785
        %v1868 = vadd.f32 %v1698, %v1787
        %v1869 = vadd.f32 %v1699, %v1861
        %1870 = vst [vmem:[%s218] sm:$0xff] %v1864
        %1871 = vst [vmem:[%s218 + $0x8] sm:$0xff] %v1865
        %1872 = vst [vmem:[%s218 + $0x10] sm:$0xff] %v1866
        %1873 = vst [vmem:[%s218 + $0x18] sm:$0xff] %v1867
        %1874 = vst [vmem:[%s218 + $0x20] sm:$0xff] %v1868
        %1875 = vst [vmem:[%s218 + $0x28] sm:$0xff] %v1869
        %v1876 = vld [vmem:[%s2] sm:$0x7]
        %v1878 = vlaneseq
        %v1879 = vshrl.u32 %v1878, 7
        %v1880 = vsub.s32 0, %v1879
        %v1881 = vrot.slane %v1876, %v1880
        %v1882 = vlaneseq
        %v1883 = vshrl.u32 %v1882, 7
        %v1884 = vsub.s32 1, %v1883
        %v1885 = vrot.slane %v1876, %v1884
        %v1886 = vlaneseq
        %v1887 = vshrl.u32 %v1886, 7
        %v1888 = vsub.s32 2, %v1887
        %v1889 = vrot.slane %v1876, %v1888
        %v1893 = vmul.f32 %v1864, %v1881
        %v1894 = vmul.f32 %v1865, %v1885
        %v1895 = vmul.f32 %v1866, %v1889
        %v1896 = vmul.f32 %v1867, %v1881
        %v1897 = vmul.f32 %v1868, %v1885
        %v1898 = vmul.f32 %v1869, %v1889
        %v1899 = vadd.f32 %v1893, %v1894
        %v1900 = vadd.f32 %v1899, %v1895
        %1901 = vadd.xlane.f32.xlu0 %v1900
        %v1902 = vpop.xlane.xlu0 %1901
        %v1903 = vadd.f32 %v1896, %v1897
        %v1904 = vadd.f32 %v1903, %v1898
        %1905 = vadd.xlane.f32.xlu0 %v1904
        %v1906 = vpop.xlane.xlu0 %1905
        %vm1907 = vcmask 7168
        %1908 = vst.msk [vmem:[%s242] sm:$0xff] %vm1907, %v1902
        %1909 = vst.msk [vmem:[%s242 + $0x8] sm:$0xff] %vm1907, %v1906
        %v1910 = vmul.f32 %v1893, %v1864
        %v1911 = vmul.f32 %v1894, %v1865
        %v1912 = vmul.f32 %v1895, %v1866
        %v1913 = vmul.f32 %v1896, %v1867
        %v1914 = vmul.f32 %v1897, %v1868
        %v1915 = vmul.f32 %v1898, %v1869
        %v1916 = vadd.f32 %v1910, %v1911
        %v1917 = vadd.f32 %v1916, %v1912
        %1918 = vadd.xlane.f32.xlu0 %v1917
        %v1919 = vpop.xlane.xlu0 %1918
        %v1920 = vadd.f32 %v1913, %v1914
        %v1921 = vadd.f32 %v1920, %v1915
        %1922 = vadd.xlane.f32.xlu0 %v1921
        %v1923 = vpop.xlane.xlu0 %1922
        %1924 = vst.msk [vmem:[%s247] sm:$0xff] %vm1907, %v1919
        %1925 = vst.msk [vmem:[%s247 + $0x8] sm:$0xff] %vm1907, %v1923
        %s1926 = sand.u32 %s96, 1
        %s1927 = scalar_lea.sflag [#allocation3], %s1926
        %s1928 = sand.u32 %s96, 1
        %s1929 = smul.addr %s1928, 48
        %s1930 = scalar_lea.vmem [#allocation2], %s1929
        %p1931 = scmp.lt.s32.totalorder %s20, 1
        %s1932 = scalar_select %p1931, %s20, 1
        %s1933 = smul.addr %s1932, 2
        %s1934 = smul.addr %s1933, 8
        %s1935 = scalar_lea.vmem %s4, %s1934
        %p1936 = scmp.lt.s32.totalorder %s20, 1
        %s1937 = scalar_select %p1936, %s20, 1
        %s1938 = smul.addr %s1937, 2
        %s1939 = smul.addr %s1938, 8
        %s1940 = scalar_lea.vmem %s5, %s1939
        // Predicated region
        $region33: #{tpu_custom_call.1} parent=31 // pred_check
          %p1941 = pneg %p106
        $region34: #{tpu_custom_call.1} parent=31 // pred_check_branch
          %1943 = sbr.rel (%p1941) target = $region36
        $region35: #{tpu_custom_call.1} parent=31 // pred_region
          %s1945 = ssub.s32 768, 768
          %1946 = vsyncadd %s1927, %s1945
          %s1947 = smul.addr %s20, 6
          %s1948 = smul.addr %s1947, 128
          %s1949 = scalar_lea.hbm %s3, %s1948
          %s1950 = sshll.u32 %s1930, 4
          %s1951 = int_to_ptr.vmem [resolvable:$true] %s1950
          %1956 = dma.vmem_to_hbm [thread:$0]  %s1951, 768, %s1949, %s1927, 384, 384, 24
        $region36: #{tpu_custom_call.1} parent=31 // pred_fallthru
          _
        // Predicated region
        $region37: #{tpu_custom_call.1} parent=31 // pred_check
          %p1957 = pneg %p132
        $region38: #{tpu_custom_call.1} parent=31 // pred_check_branch
          %1959 = sbr.rel (%p1957) target = $region40
        $region39: #{tpu_custom_call.1} parent=31 // pred_region
          _
        $region40: #{tpu_custom_call.1} parent=31 // pred_fallthru
          _
        // Predicated region
        $region41: #{tpu_custom_call.1} parent=31 // pred_check
          %p1960 = pneg %p158
        $region42: #{tpu_custom_call.1} parent=31 // pred_check_branch
          %1962 = sbr.rel (%p1960) target = $region44
        $region43: #{tpu_custom_call.1} parent=31 // pred_region
          _
        $region44: #{tpu_custom_call.1} parent=31 // pred_fallthru
          _
      $region32: #{tpu_custom_call.1} parent=5 // pred_fallthru
        _
      %p1963 = scmp.le.s32.totalorder 2, %s15
      // Predicated region
      $region45: #{tpu_custom_call.1} parent=5 // pred_check
        %p1964 = pneg %p1963
      $region46: #{tpu_custom_call.1} parent=5 // pred_check_branch
        %1966 = sbr.rel (%p1964) target = $region48
      $region47: #{tpu_custom_call.1} parent=5 // pred_region
        %s1967 = ssub.s32 %s15, 2
        // Predicated region
        $region49: #{tpu_custom_call.1} parent=47 // pred_check
          %p1968 = pneg %p112
        $region50: #{tpu_custom_call.1} parent=47 // pred_check_branch
          %1970 = sbr.rel (%p1968) target = $region52
        $region51: #{tpu_custom_call.1} parent=47 // pred_region
          %s1971 = sand.u32 %s97, 1
          %s1972 = scalar_lea.sflag [#allocation3], %s1971
          %s1973 = sand.u32 %s97, 1
          %s1974 = smul.addr %s1973, 48
          %s1975 = scalar_lea.vmem [#allocation2], %s1974
          %1976 = dma.done %s1972, 768
        $region52: #{tpu_custom_call.1} parent=47 // pred_fallthru
          _
        // Predicated region
        $region53: #{tpu_custom_call.1} parent=47 // pred_check
          %p1977 = pneg %p138
        $region54: #{tpu_custom_call.1} parent=47 // pred_check_branch
          %1979 = sbr.rel (%p1977) target = $region56
        $region55: #{tpu_custom_call.1} parent=47 // pred_region
          %p1980 = scmp.lt.s32.totalorder %s21, 1
          %s1981 = scalar_select %p1980, %s21, 1
          %s1982 = smul.addr %s1981, 2
          %s1983 = smul.addr %s1982, 8
          %s1984 = scalar_lea.vmem %s4, %s1983
        $region56: #{tpu_custom_call.1} parent=47 // pred_fallthru
          _
        // Predicated region
        $region57: #{tpu_custom_call.1} parent=47 // pred_check
          %p1985 = pneg %p164
        $region58: #{tpu_custom_call.1} parent=47 // pred_check_branch
          %1987 = sbr.rel (%p1985) target = $region60
        $region59: #{tpu_custom_call.1} parent=47 // pred_region
          %p1988 = scmp.lt.s32.totalorder %s21, 1
          %s1989 = scalar_select %p1988, %s21, 1
          %s1990 = smul.addr %s1989, 2
          %s1991 = smul.addr %s1990, 8
          %s1992 = scalar_lea.vmem %s5, %s1991
        $region60: #{tpu_custom_call.1} parent=47 // pred_fallthru
          _
      $region48: #{tpu_custom_call.1} parent=5 // pred_fallthru
        _
    $region6: #{tpu_custom_call.1} parent=1 // loop_footer
      %s19 = sadd.s32 1, %s15
    $region7: #{tpu_custom_call.1} parent=1 // loop_footer_branch
      %14 = sbr.rel target = $region3
    $region8: #{tpu_custom_call.1} parent=1 // loop_exit
      _
    %1993 = vsyncpa [#allocation3], 1
    %s1994 = scalar_lea.sflag [#allocation3], 1
    %1995 = vsyncpa %s1994, 1

</llo_original>
